<compile_context>
chip_gen: v5e
topology: v5e:2x2
jax: 0.10.0
libtpu: 0.0.40
codegen_flags: <defaults>
</compile_context>

<pallas_src>
import functools

import jax
import jax.numpy as jnp
from jax.experimental import pallas as pl
from jax.experimental.pallas import tpu as pltpu


# ---------------------------------------------------------------------------
# Fast bounded-range sine (valid for |x| <~ 1e3; SIREN args here are <= ~52).
# Single Cody–Waite reduction modulo pi, then an odd polynomial on [-pi/2, pi/2].
# Max abs error vs true sin ~5e-7 in f32 — same order as jnp.sin, far fewer VPU ops.
# ---------------------------------------------------------------------------
_INV_PI = 0.3183098861837907
_PI_HI = 3.140625                # exactly representable (9 significant bits)
_PI_LO = 9.67653589793e-04       # pi - _PI_HI
_S1 = -1.0 / 6.0
_S2 = 1.0 / 120.0
_S3 = -1.0 / 5040.0
_S4 = 1.0 / 362880.0
_S5 = -1.0 / 39916800.0
_S6 = 1.0 / 6227020800.0


def _fast_sin(x):
    k = jnp.floor(x * _INV_PI + 0.5)           # nearest multiple of pi
    r = (x - k * _PI_HI) - k * _PI_LO          # r in [-pi/2, pi/2]
    # sin(x) = (-1)^k * sin(r); fold the sign into r (sin is odd) -> no post-multiply.
    half = k * 0.5
    odd = half - jnp.floor(half)               # 0.0 for even k, 0.5 for odd k
    r = jnp.where(odd > 0.25, -r, r)
    s = r * r
    p = _S6 * s + _S5
    p = p * s + _S4
    p = p * s + _S3
    p = p * s + _S2
    p = p * s + _S1
    return r + r * (s * p)


# ---------------------------------------------------------------------------
# Kernel
# ---------------------------------------------------------------------------
def _shared_inr_kernel(xT_ref, w_first_ref, w_hidden_ref, w_dec_sine_ref,
                       w_dec_out_ref, b_out_ref, out_ref, h_ref,
                       *, hidden, num_enc_hidden):
    H = hidden
    tile_n = out_ref.shape[1]

    # Bias-folding rows: h_ref rows [H, H+8) hold a ones row followed by zeros so that
    # jnp.dot(W_aug, h_ref) implements W @ h + b on the MXU (W_aug column H = bias).
    # Re-initialized every grid step (scratch is per-core and starts uninitialized).
    rid = jax.lax.broadcasted_iota(jnp.int32, (8, tile_n), 0)
    h_ref[pl.ds(H, 8), :] = jnp.where(rid == 0, 1.0, 0.0)

    # First SineLayer on the MXU: xT is packed as [x; 1; 0...] (K padded to 8) and
    # w_first has first_omega and the bias folded in -> sin(omega0*(W0 x + b0)).
    h_ref[pl.ds(0, H), :] = _fast_sin(
        jnp.dot(w_first_ref[...], xT_ref[...], preferred_element_type=jnp.float32))

    # Hidden encoder SineLayers: sin(omega*(W h + b)), omega/bias folded into (H, H+8).
    for l in range(num_enc_hidden):
        h_ref[pl.ds(0, H), :] = _fast_sin(
            jnp.dot(w_hidden_ref[l], h_ref[...], preferred_element_type=jnp.float32))

    # All decoders fused: one (D*H, H+8) sine matmul, then one block-diagonal
    # (D*out, D*H) output projection -> a single lane-dense store.
    # TODO(synk): assumes num_decoder_layers == 2 (one sine layer + final Linear per
    #             decoder); deeper decoders need an extra stacked hidden-sine tensor.
    z = _fast_sin(jnp.dot(w_dec_sine_ref[...], h_ref[...],
                          preferred_element_type=jnp.float32))
    y = jnp.dot(w_dec_out_ref[...], z,
                preferred_element_type=jnp.float32) + b_out_ref[...]
    out_ref[...] = y.astype(out_ref.dtype)


# ---------------------------------------------------------------------------
# Wrapper
# ---------------------------------------------------------------------------
def _pick_tile_n(n_pad, cap=4096):
    """Largest tile (multiple of 128, <= cap) dividing n_pad, preferring >= 2 grid
    steps so dimension_semantics=("parallel",) can occupy both v7x TensorCores."""
    candidates = [t for t in range(128, min(n_pad, cap) + 1, 128) if n_pad % t == 0]
    multi_step = [t for t in candidates if n_pad // t >= 2]
    return max(multi_step if multi_step else candidates)


def shared_inr_forward(coords, params, *, first_omega=30.0, hidden_omega=30.0,
                       tile_n=None):
    (enc_w_first, enc_b_first, enc_w_hidden, enc_b_hidden,
     dec_w_sine, dec_b_sine, dec_w_out, dec_b_out) = params

    lead_shape = coords.shape[:-1]
    in_features = coords.shape[-1]
    x = coords.reshape(-1, in_features).astype(jnp.float32)
    n = x.shape[0]

    hidden = enc_w_first.shape[0]
    num_enc_hidden = enc_w_hidden.shape[0]
    num_decoders = dec_w_sine.shape[0]
    out_features = dec_w_out.shape[1]

    # Pad the point count to a lane multiple; padded garbage rows are sliced off after.
    n_pad = ((n + 127) // 128) * 128
    if n_pad != n:
        x = jnp.pad(x, ((0, n_pad - n), (0, 0)))
    if tile_n is None:
        tile_n = _pick_tile_n(n_pad)
    assert n_pad % tile_n == 0 and tile_n % 128 == 0

    # ---- pack operands into the fused, lane-dense, omega/bias-folded layout ----
    # (cheap one-off XLA ops; for a training loop pre-pack the weights once outside)
    k_first = max(8, ((in_features + 1 + 7) // 8) * 8)
    k_hid = hidden + 8

    # coords packed as (k_first, n_pad) = [x; 1; 0...]  (points on lanes)
    x_aug = jnp.concatenate([x, jnp.ones((n_pad, 1), jnp.float32)], axis=1)
    x_aug = jnp.pad(x_aug, ((0, 0), (0, k_first - in_features - 1)))
    xT = x_aug.T

    # first SineLayer: omega and bias folded into the (H, k_first) weight
    w_first = jnp.zeros((hidden, k_first), jnp.float32)
    w_first = w_first.at[:, :in_features].set(first_omega * enc_w_first)
    w_first = w_first.at[:, in_features].set(first_omega * enc_b_first)

    # hidden encoder SineLayers stacked: (L, H, H+8), bias (scaled by omega) in column H
    w_hid = jnp.zeros((num_enc_hidden, hidden, k_hid), jnp.float32)
    w_hid = w_hid.at[:, :, :hidden].set(hidden_omega * enc_w_hidden)
    w_hid = w_hid.at[:, :, hidden].set(hidden_omega * enc_b_hidden)

    # decoder sine layers stacked: (D*H, H+8); uses first_omega (is_first=True in PyTorch)
    w_dsine = jnp.zeros((num_decoders * hidden, k_hid), jnp.float32)
    w_dsine = w_dsine.at[:, :hidden].set(
        first_omega * dec_w_sine.reshape(num_decoders * hidden, hidden))
    w_dsine = w_dsine.at[:, hidden].set(first_omega * dec_b_sine.reshape(-1))

    # decoder final linears as one block-diagonal (D*out, D*H) matrix
    w_dout = jnp.zeros((num_decoders * out_features, num_decoders * hidden), jnp.float32)
    for d in range(num_decoders):
        w_dout = w_dout.at[d * out_features:(d + 1) * out_features,
                           d * hidden:(d + 1) * hidden].set(dec_w_out[d])
    b_out = dec_b_out.reshape(num_decoders * out_features, 1).astype(jnp.float32)

    def full_spec(a):
        return pl.BlockSpec(a.shape, lambda i, _nd=a.ndim: (0,) * _nd)

    kernel = functools.partial(_shared_inr_kernel, hidden=hidden,
                               num_enc_hidden=num_enc_hidden)

    out = pl.pallas_call(
        kernel,
        out_shape=jax.ShapeDtypeStruct((num_decoders * out_features, n_pad), jnp.float32),
        grid=(n_pad // tile_n,),
        in_specs=[
            pl.BlockSpec((k_first, tile_n), lambda i: (0, i)),
            full_spec(w_first), full_spec(w_hid),
            full_spec(w_dsine), full_spec(w_dout), full_spec(b_out),
        ],
        out_specs=pl.BlockSpec((num_decoders * out_features, tile_n), lambda i: (0, i)),
        scratch_shapes=[pltpu.VMEM((k_hid, tile_n), jnp.float32)],
        compiler_params=pltpu.CompilerParams(
            dimension_semantics=("parallel",),
            vmem_limit_bytes=32 * 1024 * 1024),   # > v5e's 16 MiB default, <= v7x physical
    )(xT, w_first, w_hid, w_dsine, w_dout, b_out)

    # Single reshape + one transpose for the whole result (keeps the in-kernel store
    # lane-dense and avoids three separate slice/transpose passes over HBM).
    out = out.reshape(num_decoders, out_features, n_pad)[:, :, :n]
    out = jnp.transpose(out, (0, 2, 1))                      # (D, n, out_features)
    # SharedINR.forward returns a list with one output per decoder.
    return [out[d].reshape(*lead_shape, out_features) for d in range(num_decoders)]


# ---------------------------------------------------------------------------
# Params / reference
# ---------------------------------------------------------------------------
def init_params(key, *, in_features, hidden_features, out_features,
                shared_encoder_layers, num_decoders,
                first_omega=30.0, hidden_omega=30.0):
    """SIREN-style init matching the PyTorch ranges. Weights stored in (out, in) layout."""
    num_enc_hidden = shared_encoder_layers - 1
    assert num_enc_hidden >= 1, "this script assumes at least one hidden encoder sine layer"
    n_keys = 2 + 2 * num_enc_hidden + 4 * num_decoders
    keys = iter(jax.random.split(key, n_keys))

    def u(k, shape, lim):
        return jax.random.uniform(k, shape, jnp.float32, minval=-lim, maxval=lim)

    # encoder first SineLayer (is_first=True): weight ~ U(-1/in, 1/in); bias ~ nn.Linear default
    enc_w_first = u(next(keys), (hidden_features, in_features), 1.0 / in_features)
    enc_b_first = u(next(keys), (hidden_features,), 1.0 / in_features ** 0.5)

    # encoder hidden SineLayers: weight ~ U(-sqrt(6/in)/omega, +)
    hid_lim = (6.0 / hidden_features) ** 0.5 / hidden_omega
    b_lim = 1.0 / hidden_features ** 0.5
    enc_w_hidden = jnp.stack([u(next(keys), (hidden_features, hidden_features), hid_lim)
                              for _ in range(num_enc_hidden)])
    enc_b_hidden = jnp.stack([u(next(keys), (hidden_features,), b_lim)
                              for _ in range(num_enc_hidden)])

    # decoders: SineLayer (is_first=True -> U(-1/in, 1/in)) + final Linear
    out_lim = (6.0 / hidden_features) ** 0.5 / max(hidden_omega, 1e-12)
    dw_s, db_s, dw_o, db_o = [], [], [], []
    for _ in range(num_decoders):
        dw_s.append(u(next(keys), (hidden_features, hidden_features), 1.0 / hidden_features))
        db_s.append(u(next(keys), (hidden_features,), b_lim))
        dw_o.append(u(next(keys), (out_features, hidden_features), out_lim))
        db_o.append(u(next(keys), (out_features,), b_lim))
    return (enc_w_first, enc_b_first, enc_w_hidden, enc_b_hidden,
            jnp.stack(dw_s), jnp.stack(db_s), jnp.stack(dw_o), jnp.stack(db_o))


def reference_forward(coords, params, *, first_omega=30.0, hidden_omega=30.0):
    """Pure-JAX reference mirroring the PyTorch SharedINR forward."""
    (enc_w_first, enc_b_first, enc_w_hidden, enc_b_hidden,
     dec_w_sine, dec_b_sine, dec_w_out, dec_b_out) = params
    h = jnp.sin(first_omega * (coords @ enc_w_first.T + enc_b_first))
    for l in range(enc_w_hidden.shape[0]):
        h = jnp.sin(hidden_omega * (h @ enc_w_hidden[l].T + enc_b_hidden[l]))
    outs = []
    for d in range(dec_w_sine.shape[0]):
        z = jnp.sin(first_omega * (h @ dec_w_sine[d].T + dec_b_sine[d]))
        outs.append(z @ dec_w_out[d].T + dec_b_out[d])
    return outs


if __name__ == "__main__":
    in_features = 2
    hidden_features = 32
    hidden_layers = 5
    out_features = 3
    shared_encoder_layers = 3
    num_decoders = 3
    first_omega = 30.0
    hidden_omega = 30.0

    key = jax.random.PRNGKey(0)
    k_coords, k_params = jax.random.split(key)

    # coords: (batch=1, num_points=256, in_features=2), values in [-1, 1]
    coords = jax.random.uniform(k_coords, (1, 256, in_features), jnp.float32,
                                minval=-1.0, maxval=1.0)

    params = init_params(
        k_params,
        in_features=in_features, hidden_features=hidden_features,
        out_features=out_features, shared_encoder_layers=shared_encoder_layers,
        num_decoders=num_decoders,
        first_omega=first_omega, hidden_omega=hidden_omega)

    outs = shared_inr_forward(coords, params,
                              first_omega=first_omega, hidden_omega=hidden_omega)
    outs = [jax.block_until_ready(o) for o in outs]

    refs = reference_forward(coords, params,
                             first_omega=first_omega, hidden_omega=hidden_omega)
    for o, r in zip(outs, refs):
        assert o.shape == (1, 256, out_features), o.shape
        err = float(jnp.max(jnp.abs(o - r)))
        # f32 everywhere; slack because sin(30*x) layers amplify the tiny (<~5e-7/activation)
        # differences between the polynomial sine / MXU matmuls and the XLA reference.
        assert err < 2e-4, err

    print("KERNEL_OK")
</pallas_src>

<mosaic_0001>
module attributes {stable_mosaic.version = 11 : i64} {
  func.func @_shared_inr_kernel(%arg0: i32, %arg1: memref<8x128xf32, #tpu.memory_space<vmem>>, %arg2: memref<32x8xf32, #tpu.memory_space<vmem>>, %arg3: memref<2x32x40xf32, #tpu.memory_space<vmem>>, %arg4: memref<96x40xf32, #tpu.memory_space<vmem>>, %arg5: memref<9x96xf32, #tpu.memory_space<vmem>>, %arg6: memref<9x1xf32, #tpu.memory_space<vmem>>, %arg7: memref<9x128xf32, #tpu.memory_space<vmem>>, %arg8: memref<40x128xf32, #tpu.memory_space<vmem>>) attributes {dimension_semantics = [#tpu.dimension_semantics<parallel>], iteration_bounds = array<i64: 2>, scalar_prefetch = 0 : i64, scratch_operands = 1 : i64, tpu.core_type = #tpu.core_type<tc>, window_params = [{transform_indices = @transform_0, window_bounds = array<i64: 8, 128>}, {pipeline_mode = #tpu.pipeline_mode<synchronous>, transform_indices = @transform_1, window_bounds = array<i64: 32, 8>}, {pipeline_mode = #tpu.pipeline_mode<synchronous>, transform_indices = @transform_2, window_bounds = array<i64: 2, 32, 40>}, {pipeline_mode = #tpu.pipeline_mode<synchronous>, transform_indices = @transform_3, window_bounds = array<i64: 96, 40>}, {pipeline_mode = #tpu.pipeline_mode<synchronous>, transform_indices = @transform_4, window_bounds = array<i64: 9, 96>}, {pipeline_mode = #tpu.pipeline_mode<synchronous>, transform_indices = @transform_5, window_bounds = array<i64: 9, 1>}, {transform_indices = @transform_6, window_bounds = array<i64: 9, 128>}]} {
    %0 = tpu.iota {dimensions = array<i32: 0>} : vector<8x128xi32>
    %c0_i32 = arith.constant 0 : i32
    %1 = vector.broadcast %c0_i32 : i32 to vector<8x128xi32>
    %2 = arith.cmpi eq, %0, %1 : vector<8x128xi32>
    %cst = arith.constant 1.000000e+00 : f32
    %cst_0 = arith.constant 0.000000e+00 : f32
    %3 = vector.broadcast %cst : f32 to vector<8x128xf32>
    %4 = vector.broadcast %cst_0 : f32 to vector<8x128xf32>
    %5 = arith.select %2, %3, %4 : vector<8x128xi1>, vector<8x128xf32>
    %c32 = arith.constant 32 : index
    %c0 = arith.constant 0 : index
    %6 = vector.load %arg8[%c32, %c0] : memref<40x128xf32, #tpu.memory_space<vmem>>, vector<8x128xf32>
    tpu.vector_store %arg8[%c32, %c0], %5 {strides = array<i32>} : memref<40x128xf32, #tpu.memory_space<vmem>>, vector<8x128xf32>,
    %c0_1 = arith.constant 0 : index
    %c0_2 = arith.constant 0 : index
    %7 = vector.load %arg2[%c0_1, %c0_2] : memref<32x8xf32, #tpu.memory_space<vmem>>, vector<32x8xf32>
    %c0_3 = arith.constant 0 : index
    %c0_4 = arith.constant 0 : index
    %8 = vector.load %arg1[%c0_3, %c0_4] : memref<8x128xf32, #tpu.memory_space<vmem>>, vector<8x128xf32>
    %cst_5 = arith.constant dense<0.000000e+00> : vector<32x128xf32>
    %9 = tpu.matmul %7, %8, %cst_5 {dimension_numbers = #tpu.dot_dimension_numbers<[1], [0], [0], [1], [0, 0, 1, 1], [], []>} : vector<32x8xf32>, vector<8x128xf32>, vector<32x128xf32> -> vector<32x128xf32>
    %cst_6 = arith.constant 0.318309873 : f32
    %10 = vector.broadcast %cst_6 : f32 to vector<32x128xf32>
    %11 = arith.mulf %9, %10 : vector<32x128xf32>
    %cst_7 = arith.constant 5.000000e-01 : f32
    %12 = vector.broadcast %cst_7 : f32 to vector<32x128xf32>
    %13 = arith.addf %11, %12 : vector<32x128xf32>
    %14 = math.floor %13 : vector<32x128xf32>
    %cst_8 = arith.constant 3.140625 : f32
    %15 = vector.broadcast %cst_8 : f32 to vector<32x128xf32>
    %16 = arith.mulf %14, %15 : vector<32x128xf32>
    %17 = arith.subf %9, %16 : vector<32x128xf32>
    %cst_9 = arith.constant 9.67653584E-4 : f32
    %18 = vector.broadcast %cst_9 : f32 to vector<32x128xf32>
    %19 = arith.mulf %14, %18 : vector<32x128xf32>
    %20 = arith.subf %17, %19 : vector<32x128xf32>
    %cst_10 = arith.constant 5.000000e-01 : f32
    %21 = vector.broadcast %cst_10 : f32 to vector<32x128xf32>
    %22 = arith.mulf %14, %21 : vector<32x128xf32>
    %23 = math.floor %22 : vector<32x128xf32>
    %24 = arith.subf %22, %23 : vector<32x128xf32>
    %cst_11 = arith.constant 2.500000e-01 : f32
    %25 = vector.broadcast %cst_11 : f32 to vector<32x128xf32>
    %26 = arith.cmpf ogt, %24, %25 : vector<32x128xf32>
    %cst_12 = arith.constant 0.000000e+00 : f32
    %27 = vector.broadcast %cst_12 : f32 to vector<32x128xf32>
    %28 = arith.subf %27, %20 : vector<32x128xf32>
    %29 = arith.select %26, %28, %20 : vector<32x128xi1>, vector<32x128xf32>
    %30 = arith.mulf %29, %29 : vector<32x128xf32>
    %cst_13 = arith.constant 1.60590444E-10 : f32
    %31 = vector.broadcast %cst_13 : f32 to vector<32x128xf32>
    %32 = arith.mulf %31, %30 : vector<32x128xf32>
    %cst_14 = arith.constant -2.50521079E-8 : f32
    %33 = vector.broadcast %cst_14 : f32 to vector<32x128xf32>
    %34 = arith.addf %32, %33 : vector<32x128xf32>
    %35 = arith.mulf %34, %30 : vector<32x128xf32>
    %cst_15 = arith.constant 2.75573188E-6 : f32
    %36 = vector.broadcast %cst_15 : f32 to vector<32x128xf32>
    %37 = arith.addf %35, %36 : vector<32x128xf32>
    %38 = arith.mulf %37, %30 : vector<32x128xf32>
    %cst_16 = arith.constant -1.98412701E-4 : f32
    %39 = vector.broadcast %cst_16 : f32 to vector<32x128xf32>
    %40 = arith.addf %38, %39 : vector<32x128xf32>
    %41 = arith.mulf %40, %30 : vector<32x128xf32>
    %cst_17 = arith.constant 0.00833333377 : f32
    %42 = vector.broadcast %cst_17 : f32 to vector<32x128xf32>
    %43 = arith.addf %41, %42 : vector<32x128xf32>
    %44 = arith.mulf %43, %30 : vector<32x128xf32>
    %cst_18 = arith.constant -0.166666672 : f32
    %45 = vector.broadcast %cst_18 : f32 to vector<32x128xf32>
    %46 = arith.addf %44, %45 : vector<32x128xf32>
    %47 = arith.mulf %30, %46 : vector<32x128xf32>
    %48 = arith.mulf %29, %47 : vector<32x128xf32>
    %49 = arith.addf %29, %48 : vector<32x128xf32>
    %c0_19 = arith.constant 0 : index
    %c0_20 = arith.constant 0 : index
    %50 = vector.load %arg8[%c0_19, %c0_20] : memref<40x128xf32, #tpu.memory_space<vmem>>, vector<32x128xf32>
    tpu.vector_store %arg8[%c0_19, %c0_20], %49 {strides = array<i32>} : memref<40x128xf32, #tpu.memory_space<vmem>>, vector<32x128xf32>,
    %c0_21 = arith.constant 0 : index
    %c0_22 = arith.constant 0 : index
    %c0_23 = arith.constant 0 : index
    %51 = vector.load %arg3[%c0_21, %c0_22, %c0_23] : memref<2x32x40xf32, #tpu.memory_space<vmem>>, vector<1x32x40xf32>
    %52 = vector.shape_cast %51 : vector<1x32x40xf32> to vector<32x40xf32>
    %c0_24 = arith.constant 0 : index
    %c0_25 = arith.constant 0 : index
    %53 = vector.load %arg8[%c0_24, %c0_25] : memref<40x128xf32, #tpu.memory_space<vmem>>, vector<40x128xf32>
    %cst_26 = arith.constant dense<0.000000e+00> : vector<32x128xf32>
    %54 = tpu.matmul %52, %53, %cst_26 {dimension_numbers = #tpu.dot_dimension_numbers<[1], [0], [0], [1], [0, 0, 1, 1], [], []>} : vector<32x40xf32>, vector<40x128xf32>, vector<32x128xf32> -> vector<32x128xf32>
    %cst_27 = arith.constant 0.318309873 : f32
    %55 = vector.broadcast %cst_27 : f32 to vector<32x128xf32>
    %56 = arith.mulf %54, %55 : vector<32x128xf32>
    %cst_28 = arith.constant 5.000000e-01 : f32
    %57 = vector.broadcast %cst_28 : f32 to vector<32x128xf32>
    %58 = arith.addf %56, %57 : vector<32x128xf32>
    %59 = math.floor %58 : vector<32x128xf32>
    %cst_29 = arith.constant 3.140625 : f32
    %60 = vector.broadcast %cst_29 : f32 to vector<32x128xf32>
    %61 = arith.mulf %59, %60 : vector<32x128xf32>
    %62 = arith.subf %54, %61 : vector<32x128xf32>
    %cst_30 = arith.constant 9.67653584E-4 : f32
    %63 = vector.broadcast %cst_30 : f32 to vector<32x128xf32>
    %64 = arith.mulf %59, %63 : vector<32x128xf32>
    %65 = arith.subf %62, %64 : vector<32x128xf32>
    %cst_31 = arith.constant 5.000000e-01 : f32
    %66 = vector.broadcast %cst_31 : f32 to vector<32x128xf32>
    %67 = arith.mulf %59, %66 : vector<32x128xf32>
    %68 = math.floor %67 : vector<32x128xf32>
    %69 = arith.subf %67, %68 : vector<32x128xf32>
    %cst_32 = arith.constant 2.500000e-01 : f32
    %70 = vector.broadcast %cst_32 : f32 to vector<32x128xf32>
    %71 = arith.cmpf ogt, %69, %70 : vector<32x128xf32>
    %cst_33 = arith.constant 0.000000e+00 : f32
    %72 = vector.broadcast %cst_33 : f32 to vector<32x128xf32>
    %73 = arith.subf %72, %65 : vector<32x128xf32>
    %74 = arith.select %71, %73, %65 : vector<32x128xi1>, vector<32x128xf32>
    %75 = arith.mulf %74, %74 : vector<32x128xf32>
    %cst_34 = arith.constant 1.60590444E-10 : f32
    %76 = vector.broadcast %cst_34 : f32 to vector<32x128xf32>
    %77 = arith.mulf %76, %75 : vector<32x128xf32>
    %cst_35 = arith.constant -2.50521079E-8 : f32
    %78 = vector.broadcast %cst_35 : f32 to vector<32x128xf32>
    %79 = arith.addf %77, %78 : vector<32x128xf32>
    %80 = arith.mulf %79, %75 : vector<32x128xf32>
    %cst_36 = arith.constant 2.75573188E-6 : f32
    %81 = vector.broadcast %cst_36 : f32 to vector<32x128xf32>
    %82 = arith.addf %80, %81 : vector<32x128xf32>
    %83 = arith.mulf %82, %75 : vector<32x128xf32>
    %cst_37 = arith.constant -1.98412701E-4 : f32
    %84 = vector.broadcast %cst_37 : f32 to vector<32x128xf32>
    %85 = arith.addf %83, %84 : vector<32x128xf32>
    %86 = arith.mulf %85, %75 : vector<32x128xf32>
    %cst_38 = arith.constant 0.00833333377 : f32
    %87 = vector.broadcast %cst_38 : f32 to vector<32x128xf32>
    %88 = arith.addf %86, %87 : vector<32x128xf32>
    %89 = arith.mulf %88, %75 : vector<32x128xf32>
    %cst_39 = arith.constant -0.166666672 : f32
    %90 = vector.broadcast %cst_39 : f32 to vector<32x128xf32>
    %91 = arith.addf %89, %90 : vector<32x128xf32>
    %92 = arith.mulf %75, %91 : vector<32x128xf32>
    %93 = arith.mulf %74, %92 : vector<32x128xf32>
    %94 = arith.addf %74, %93 : vector<32x128xf32>
    %c0_40 = arith.constant 0 : index
    %c0_41 = arith.constant 0 : index
    %95 = vector.load %arg8[%c0_40, %c0_41] : memref<40x128xf32, #tpu.memory_space<vmem>>, vector<32x128xf32>
    tpu.vector_store %arg8[%c0_40, %c0_41], %94 {strides = array<i32>} : memref<40x128xf32, #tpu.memory_space<vmem>>, vector<32x128xf32>,
    %c1 = arith.constant 1 : index
    %c0_42 = arith.constant 0 : index
    %c0_43 = arith.constant 0 : index
    %96 = vector.load %arg3[%c1, %c0_42, %c0_43] : memref<2x32x40xf32, #tpu.memory_space<vmem>>, vector<1x32x40xf32>
    %97 = vector.shape_cast %96 : vector<1x32x40xf32> to vector<32x40xf32>
    %c0_44 = arith.constant 0 : index
    %c0_45 = arith.constant 0 : index
    %98 = vector.load %arg8[%c0_44, %c0_45] : memref<40x128xf32, #tpu.memory_space<vmem>>, vector<40x128xf32>
    %cst_46 = arith.constant dense<0.000000e+00> : vector<32x128xf32>
    %99 = tpu.matmul %97, %98, %cst_46 {dimension_numbers = #tpu.dot_dimension_numbers<[1], [0], [0], [1], [0, 0, 1, 1], [], []>} : vector<32x40xf32>, vector<40x128xf32>, vector<32x128xf32> -> vector<32x128xf32>
    %cst_47 = arith.constant 0.318309873 : f32
    %100 = vector.broadcast %cst_47 : f32 to vector<32x128xf32>
    %101 = arith.mulf %99, %100 : vector<32x128xf32>
    %cst_48 = arith.constant 5.000000e-01 : f32
    %102 = vector.broadcast %cst_48 : f32 to vector<32x128xf32>
    %103 = arith.addf %101, %102 : vector<32x128xf32>
    %104 = math.floor %103 : vector<32x128xf32>
    %cst_49 = arith.constant 3.140625 : f32
    %105 = vector.broadcast %cst_49 : f32 to vector<32x128xf32>
    %106 = arith.mulf %104, %105 : vector<32x128xf32>
    %107 = arith.subf %99, %106 : vector<32x128xf32>
    %cst_50 = arith.constant 9.67653584E-4 : f32
    %108 = vector.broadcast %cst_50 : f32 to vector<32x128xf32>
    %109 = arith.mulf %104, %108 : vector<32x128xf32>
    %110 = arith.subf %107, %109 : vector<32x128xf32>
    %cst_51 = arith.constant 5.000000e-01 : f32
    %111 = vector.broadcast %cst_51 : f32 to vector<32x128xf32>
    %112 = arith.mulf %104, %111 : vector<32x128xf32>
    %113 = math.floor %112 : vector<32x128xf32>
    %114 = arith.subf %112, %113 : vector<32x128xf32>
    %cst_52 = arith.constant 2.500000e-01 : f32
    %115 = vector.broadcast %cst_52 : f32 to vector<32x128xf32>
    %116 = arith.cmpf ogt, %114, %115 : vector<32x128xf32>
    %cst_53 = arith.constant 0.000000e+00 : f32
    %117 = vector.broadcast %cst_53 : f32 to vector<32x128xf32>
    %118 = arith.subf %117, %110 : vector<32x128xf32>
    %119 = arith.select %116, %118, %110 : vector<32x128xi1>, vector<32x128xf32>
    %120 = arith.mulf %119, %119 : vector<32x128xf32>
    %cst_54 = arith.constant 1.60590444E-10 : f32
    %121 = vector.broadcast %cst_54 : f32 to vector<32x128xf32>
    %122 = arith.mulf %121, %120 : vector<32x128xf32>
    %cst_55 = arith.constant -2.50521079E-8 : f32
    %123 = vector.broadcast %cst_55 : f32 to vector<32x128xf32>
    %124 = arith.addf %122, %123 : vector<32x128xf32>
    %125 = arith.mulf %124, %120 : vector<32x128xf32>
    %cst_56 = arith.constant 2.75573188E-6 : f32
    %126 = vector.broadcast %cst_56 : f32 to vector<32x128xf32>
    %127 = arith.addf %125, %126 : vector<32x128xf32>
    %128 = arith.mulf %127, %120 : vector<32x128xf32>
    %cst_57 = arith.constant -1.98412701E-4 : f32
    %129 = vector.broadcast %cst_57 : f32 to vector<32x128xf32>
    %130 = arith.addf %128, %129 : vector<32x128xf32>
    %131 = arith.mulf %130, %120 : vector<32x128xf32>
    %cst_58 = arith.constant 0.00833333377 : f32
    %132 = vector.broadcast %cst_58 : f32 to vector<32x128xf32>
    %133 = arith.addf %131, %132 : vector<32x128xf32>
    %134 = arith.mulf %133, %120 : vector<32x128xf32>
    %cst_59 = arith.constant -0.166666672 : f32
    %135 = vector.broadcast %cst_59 : f32 to vector<32x128xf32>
    %136 = arith.addf %134, %135 : vector<32x128xf32>
    %137 = arith.mulf %120, %136 : vector<32x128xf32>
    %138 = arith.mulf %119, %137 : vector<32x128xf32>
    %139 = arith.addf %119, %138 : vector<32x128xf32>
    %c0_60 = arith.constant 0 : index
    %c0_61 = arith.constant 0 : index
    %140 = vector.load %arg8[%c0_60, %c0_61] : memref<40x128xf32, #tpu.memory_space<vmem>>, vector<32x128xf32>
    tpu.vector_store %arg8[%c0_60, %c0_61], %139 {strides = array<i32>} : memref<40x128xf32, #tpu.memory_space<vmem>>, vector<32x128xf32>,
    %c0_62 = arith.constant 0 : index
    %c0_63 = arith.constant 0 : index
    %141 = vector.load %arg4[%c0_62, %c0_63] : memref<96x40xf32, #tpu.memory_space<vmem>>, vector<96x40xf32>
    %c0_64 = arith.constant 0 : index
    %c0_65 = arith.constant 0 : index
    %142 = vector.load %arg8[%c0_64, %c0_65] : memref<40x128xf32, #tpu.memory_space<vmem>>, vector<40x128xf32>
    %cst_66 = arith.constant dense<0.000000e+00> : vector<96x128xf32>
    %143 = tpu.matmul %141, %142, %cst_66 {dimension_numbers = #tpu.dot_dimension_numbers<[1], [0], [0], [1], [0, 0, 1, 1], [], []>} : vector<96x40xf32>, vector<40x128xf32>, vector<96x128xf32> -> vector<96x128xf32>
    %cst_67 = arith.constant 0.318309873 : f32
    %144 = vector.broadcast %cst_67 : f32 to vector<96x128xf32>
    %145 = arith.mulf %143, %144 : vector<96x128xf32>
    %cst_68 = arith.constant 5.000000e-01 : f32
    %146 = vector.broadcast %cst_68 : f32 to vector<96x128xf32>
    %147 = arith.addf %145, %146 : vector<96x128xf32>
    %148 = math.floor %147 : vector<96x128xf32>
    %cst_69 = arith.constant 3.140625 : f32
    %149 = vector.broadcast %cst_69 : f32 to vector<96x128xf32>
    %150 = arith.mulf %148, %149 : vector<96x128xf32>
    %151 = arith.subf %143, %150 : vector<96x128xf32>
    %cst_70 = arith.constant 9.67653584E-4 : f32
    %152 = vector.broadcast %cst_70 : f32 to vector<96x128xf32>
    %153 = arith.mulf %148, %152 : vector<96x128xf32>
    %154 = arith.subf %151, %153 : vector<96x128xf32>
    %cst_71 = arith.constant 5.000000e-01 : f32
    %155 = vector.broadcast %cst_71 : f32 to vector<96x128xf32>
    %156 = arith.mulf %148, %155 : vector<96x128xf32>
    %157 = math.floor %156 : vector<96x128xf32>
    %158 = arith.subf %156, %157 : vector<96x128xf32>
    %cst_72 = arith.constant 2.500000e-01 : f32
    %159 = vector.broadcast %cst_72 : f32 to vector<96x128xf32>
    %160 = arith.cmpf ogt, %158, %159 : vector<96x128xf32>
    %cst_73 = arith.constant 0.000000e+00 : f32
    %161 = vector.broadcast %cst_73 : f32 to vector<96x128xf32>
    %162 = arith.subf %161, %154 : vector<96x128xf32>
    %163 = arith.select %160, %162, %154 : vector<96x128xi1>, vector<96x128xf32>
    %164 = arith.mulf %163, %163 : vector<96x128xf32>
    %cst_74 = arith.constant 1.60590444E-10 : f32
    %165 = vector.broadcast %cst_74 : f32 to vector<96x128xf32>
    %166 = arith.mulf %165, %164 : vector<96x128xf32>
    %cst_75 = arith.constant -2.50521079E-8 : f32
    %167 = vector.broadcast %cst_75 : f32 to vector<96x128xf32>
    %168 = arith.addf %166, %167 : vector<96x128xf32>
    %169 = arith.mulf %168, %164 : vector<96x128xf32>
    %cst_76 = arith.constant 2.75573188E-6 : f32
    %170 = vector.broadcast %cst_76 : f32 to vector<96x128xf32>
    %171 = arith.addf %169, %170 : vector<96x128xf32>
    %172 = arith.mulf %171, %164 : vector<96x128xf32>
    %cst_77 = arith.constant -1.98412701E-4 : f32
    %173 = vector.broadcast %cst_77 : f32 to vector<96x128xf32>
    %174 = arith.addf %172, %173 : vector<96x128xf32>
    %175 = arith.mulf %174, %164 : vector<96x128xf32>
    %cst_78 = arith.constant 0.00833333377 : f32
    %176 = vector.broadcast %cst_78 : f32 to vector<96x128xf32>
    %177 = arith.addf %175, %176 : vector<96x128xf32>
    %178 = arith.mulf %177, %164 : vector<96x128xf32>
    %cst_79 = arith.constant -0.166666672 : f32
    %179 = vector.broadcast %cst_79 : f32 to vector<96x128xf32>
    %180 = arith.addf %178, %179 : vector<96x128xf32>
    %181 = arith.mulf %164, %180 : vector<96x128xf32>
    %182 = arith.mulf %163, %181 : vector<96x128xf32>
    %183 = arith.addf %163, %182 : vector<96x128xf32>
    %c0_80 = arith.constant 0 : index
    %c0_81 = arith.constant 0 : index
    %184 = vector.load %arg5[%c0_80, %c0_81] : memref<9x96xf32, #tpu.memory_space<vmem>>, vector<9x96xf32>
    %cst_82 = arith.constant dense<0.000000e+00> : vector<9x128xf32>
    %185 = tpu.matmul %184, %183, %cst_82 {dimension_numbers = #tpu.dot_dimension_numbers<[1], [0], [0], [1], [0, 0, 1, 1], [], []>} : vector<9x96xf32>, vector<96x128xf32>, vector<9x128xf32> -> vector<9x128xf32>
    %c0_83 = arith.constant 0 : index
    %c0_84 = arith.constant 0 : index
    %186 = vector.load %arg6[%c0_83, %c0_84] : memref<9x1xf32, #tpu.memory_space<vmem>>, vector<9x1xf32>
    %187 = vector.broadcast %186 : vector<9x1xf32> to vector<9x128xf32>
    %188 = arith.addf %185, %187 : vector<9x128xf32>
    %c0_85 = arith.constant 0 : index
    %c0_86 = arith.constant 0 : index
    %189 = vector.load %arg7[%c0_85, %c0_86] : memref<9x128xf32, #tpu.memory_space<vmem>>, vector<9x128xf32>
    tpu.vector_store %arg7[%c0_85, %c0_86], %188 {strides = array<i32>} : memref<9x128xf32, #tpu.memory_space<vmem>>, vector<9x128xf32>,
    return
  }
  func.func @transform_0(%arg0: i32) -> (i32, i32) {
    %c0_i32 = arith.constant 0 : i32
    %c0_i32_0 = arith.constant 0 : i32
    return %c0_i32, %arg0 : i32, i32
  }
  func.func @transform_1(%arg0: i32) -> (i32, i32) {
    %c0_i32 = arith.constant 0 : i32
    %c0_i32_0 = arith.constant 0 : i32
    %c0_i32_1 = arith.constant 0 : i32
    return %c0_i32, %c0_i32_0 : i32, i32
  }
  func.func @transform_2(%arg0: i32) -> (i32, i32, i32) {
    %c0_i32 = arith.constant 0 : i32
    %c0_i32_0 = arith.constant 0 : i32
    %c0_i32_1 = arith.constant 0 : i32
    %c0_i32_2 = arith.constant 0 : i32
    return %c0_i32, %c0_i32_0, %c0_i32_1 : i32, i32, i32
  }
  func.func @transform_3(%arg0: i32) -> (i32, i32) {
    %c0_i32 = arith.constant 0 : i32
    %c0_i32_0 = arith.constant 0 : i32
    %c0_i32_1 = arith.constant 0 : i32
    return %c0_i32, %c0_i32_0 : i32, i32
  }
  func.func @transform_4(%arg0: i32) -> (i32, i32) {
    %c0_i32 = arith.constant 0 : i32
    %c0_i32_0 = arith.constant 0 : i32
    %c0_i32_1 = arith.constant 0 : i32
    return %c0_i32, %c0_i32_0 : i32, i32
  }
  func.func @transform_5(%arg0: i32) -> (i32, i32) {
    %c0_i32 = arith.constant 0 : i32
    %c0_i32_0 = arith.constant 0 : i32
    %c0_i32_1 = arith.constant 0 : i32
    return %c0_i32, %c0_i32_0 : i32, i32
  }
  func.func @transform_6(%arg0: i32) -> (i32, i32) {
    %c0_i32 = arith.constant 0 : i32
    %c0_i32_0 = arith.constant 0 : i32
    return %c0_i32, %arg0 : i32, i32
  }
}

</mosaic_0001>

<llo_original>
// kernel: tpu_custom_call.1
$region0: #{tpu_custom_call.1}
  #allocation0 [shape = 'u32[]', space=smem, size = 0x4, offset = 0x4, fixed_abs, tag = 'smem constant byte address 0x4 - core index']
  #allocation1 [shape = 'u32[72,128]{1,0:T(1,128)}', space=vmem, size = 0x9000, scoped, tag = 'internal scratch']
  #allocation2 [shape = 'f32[40,128]{1,0:T(8,128)}', space=vmem, size = 0x5000, scoped, tag = 'scratch operand']
  %s0 = inlined_call_operand.vmem [shape: f32[8,256], index: 0, kind: input, shape index: {}]
  %s1 = inlined_call_operand.vmem [shape: f32[32,8], index: 1, kind: input, shape index: {}]
  %s2 = inlined_call_operand.vmem [shape: f32[2,32,40], index: 2, kind: input, shape index: {}]
  %s3 = inlined_call_operand.vmem [shape: f32[96,40], index: 3, kind: input, shape index: {}]
  %s4 = inlined_call_operand.vmem [shape: f32[9,96], index: 4, kind: input, shape index: {}]
  %s5 = inlined_call_operand.vmem [shape: f32[9,1], index: 5, kind: input, shape index: {}]
  %s6 = inlined_call_operand.hbm [shape: f32[9,256], index: 6, kind: output, shape index: {}]
  %s7 = sld [smem:[#allocation0]]
  $region57: #{tpu_custom_call.1} parent=0
    _
  %s9 = ssub.s32 1, %s7
  %s10 = scalar_select 0, %s9, %s7
  $region1: #{tpu_custom_call.1} parent=0
    #allocation3 [shape = 'u8[16384]{0}', space=vmem, size = 0x4000, scoped, tag = 'output window, operand 0']
    #allocation4 [shape = 's32[2]{0}', space=sflag, size = 0x8, scoped, tag = 'scoped memory for tpu_custom_call.1']
    %11 = vsyncpa [#allocation4], 0
    %s12 = scalar_lea.sflag [#allocation4], 1
    %13 = vsyncpa %s12, 0
    loop: start=0, step=1, limit=4
    $region2: #{tpu_custom_call.1} parent=1 // loop_pre_header
      _
    $region3: #{tpu_custom_call.1} parent=1 // loop_header
      %s15 = sphi 0, %s19
      %p16 = scmp.ge.s32.totalorder %s15, 4
      %s25 = sphi 0, %s27
      %s28 = sphi 0, %s25
      %s29 = sphi 0, %s28
      %s45 = sphi 0, %s29
      %s49 = sphi 0, %s49
      %s51 = sphi 0, %s49
      %s52 = sphi 0, %s51
      %s66 = sphi 0, %s52
      %s70 = sphi 0, %s70
      %s72 = sphi 0, %s70
      %s73 = sphi 0, %s72
      %s87 = sphi 0, %s73
      %s91 = sphi 0, %s91
      %s93 = sphi 0, %s91
      %s94 = sphi 0, %s93
      %s108 = sphi 0, %s94
      %s112 = sphi 0, %s112
      %s114 = sphi 0, %s112
      %s115 = sphi 0, %s114
      %s129 = sphi 0, %s115
      %s133 = sphi 0, %s133
      %s135 = sphi 0, %s133
      %s136 = sphi 0, %s135
      %s150 = sphi 0, %s136
      %s156 = sphi 0, %s158
      %s159 = sphi 0, %s156
      %s160 = sphi 0, %s159
      %s176 = sphi 0, %s160
    $region4: #{tpu_custom_call.1} parent=1 // loop_header_branch
      %18 = sbr.rel (%p16) target = $region8
    $region5: #{tpu_custom_call.1} parent=1 // loop_body
      %s20 = ssub.s32 %s15, 1
      %s21 = ssub.s32 %s15, 2
      %s22 = sadd.s32 %s15, 1
      %s23 = ssub.s32 %s15, %s22
      %p24 = scmp.eq.s32.totalorder %s23, 0
      %s26 = sadd.s32 %s25, 1
      %s27 = scalar_select %p24, %s25, %s26
      %p30 = pneg %p24
      %p31 = scmp.eq.s32.totalorder %s15, 1
      %p32 = por %p30, %p31
      %p33 = scmp.ne.s32.totalorder %s25, %s28
      %p34 = scmp.eq.s32.totalorder %s15, 0
      %p35 = por %p33, %p34
      %p36 = scmp.ne.s32.totalorder %s25, %s28
      %p37 = scmp.eq.s32.totalorder %s20, 1
      %p38 = por %p36, %p37
      %p39 = scmp.ne.s32.totalorder %s28, %s29
      %p40 = scmp.eq.s32.totalorder %s20, 0
      %p41 = por %p39, %p40
      %p42 = scmp.ne.s32.totalorder %s28, %s29
      %p43 = scmp.eq.s32.totalorder %s21, 1
      %p44 = por %p42, %p43
      %p46 = scmp.ne.s32.totalorder %s29, %s45
      %p47 = scmp.eq.s32.totalorder %s21, 0
      %p48 = por %p46, %p47
      %s50 = sadd.s32 %s49, 1
      %p53 = scmp.eq.s32.totalorder %s15, 1
      %p54 = scmp.ne.s32.totalorder %s49, %s51
      %p55 = scmp.eq.s32.totalorder %s15, 0
      %p56 = por %p54, %p55
      %p57 = scmp.ne.s32.totalorder %s49, %s51
      %p58 = scmp.eq.s32.totalorder %s20, 1
      %p59 = por %p57, %p58
      %p60 = scmp.ne.s32.totalorder %s51, %s52
      %p61 = scmp.eq.s32.totalorder %s20, 0
      %p62 = por %p60, %p61
      %p63 = scmp.ne.s32.totalorder %s51, %s52
      %p64 = scmp.eq.s32.totalorder %s21, 1
      %p65 = por %p63, %p64
      %p67 = scmp.ne.s32.totalorder %s52, %s66
      %p68 = scmp.eq.s32.totalorder %s21, 0
      %p69 = por %p67, %p68
      %s71 = sadd.s32 %s70, 1
      %p74 = scmp.eq.s32.totalorder %s15, 1
      %p75 = scmp.ne.s32.totalorder %s70, %s72
      %p76 = scmp.eq.s32.totalorder %s15, 0
      %p77 = por %p75, %p76
      %p78 = scmp.ne.s32.totalorder %s70, %s72
      %p79 = scmp.eq.s32.totalorder %s20, 1
      %p80 = por %p78, %p79
      %p81 = scmp.ne.s32.totalorder %s72, %s73
      %p82 = scmp.eq.s32.totalorder %s20, 0
      %p83 = por %p81, %p82
      %p84 = scmp.ne.s32.totalorder %s72, %s73
      %p85 = scmp.eq.s32.totalorder %s21, 1
      %p86 = por %p84, %p85
      %p88 = scmp.ne.s32.totalorder %s73, %s87
      %p89 = scmp.eq.s32.totalorder %s21, 0
      %p90 = por %p88, %p89
      %s92 = sadd.s32 %s91, 1
      %p95 = scmp.eq.s32.totalorder %s15, 1
      %p96 = scmp.ne.s32.totalorder %s91, %s93
      %p97 = scmp.eq.s32.totalorder %s15, 0
      %p98 = por %p96, %p97
      %p99 = scmp.ne.s32.totalorder %s91, %s93
      %p100 = scmp.eq.s32.totalorder %s20, 1
      %p101 = por %p99, %p100
      %p102 = scmp.ne.s32.totalorder %s93, %s94
      %p103 = scmp.eq.s32.totalorder %s20, 0
      %p104 = por %p102, %p103
      %p105 = scmp.ne.s32.totalorder %s93, %s94
      %p106 = scmp.eq.s32.totalorder %s21, 1
      %p107 = por %p105, %p106
      %p109 = scmp.ne.s32.totalorder %s94, %s108
      %p110 = scmp.eq.s32.totalorder %s21, 0
      %p111 = por %p109, %p110
      %s113 = sadd.s32 %s112, 1
      %p116 = scmp.eq.s32.totalorder %s15, 1
      %p117 = scmp.ne.s32.totalorder %s112, %s114
      %p118 = scmp.eq.s32.totalorder %s15, 0
      %p119 = por %p117, %p118
      %p120 = scmp.ne.s32.totalorder %s112, %s114
      %p121 = scmp.eq.s32.totalorder %s20, 1
      %p122 = por %p120, %p121
      %p123 = scmp.ne.s32.totalorder %s114, %s115
      %p124 = scmp.eq.s32.totalorder %s20, 0
      %p125 = por %p123, %p124
      %p126 = scmp.ne.s32.totalorder %s114, %s115
      %p127 = scmp.eq.s32.totalorder %s21, 1
      %p128 = por %p126, %p127
      %p130 = scmp.ne.s32.totalorder %s115, %s129
      %p131 = scmp.eq.s32.totalorder %s21, 0
      %p132 = por %p130, %p131
      %s134 = sadd.s32 %s133, 1
      %p137 = scmp.eq.s32.totalorder %s15, 1
      %p138 = scmp.ne.s32.totalorder %s133, %s135
      %p139 = scmp.eq.s32.totalorder %s15, 0
      %p140 = por %p138, %p139
      %p141 = scmp.ne.s32.totalorder %s133, %s135
      %p142 = scmp.eq.s32.totalorder %s20, 1
      %p143 = por %p141, %p142
      %p144 = scmp.ne.s32.totalorder %s135, %s136
      %p145 = scmp.eq.s32.totalorder %s20, 0
      %p146 = por %p144, %p145
      %p147 = scmp.ne.s32.totalorder %s135, %s136
      %p148 = scmp.eq.s32.totalorder %s21, 1
      %p149 = por %p147, %p148
      %p151 = scmp.ne.s32.totalorder %s136, %s150
      %p152 = scmp.eq.s32.totalorder %s21, 0
      %p153 = por %p151, %p152
      %s154 = ssub.s32 %s15, %s22
      %p155 = scmp.eq.s32.totalorder %s154, 0
      %s157 = sadd.s32 %s156, 1
      %s158 = scalar_select %p155, %s156, %s157
      %p161 = pneg %p155
      %p162 = scmp.eq.s32.totalorder %s15, 1
      %p163 = por %p161, %p162
      %p164 = scmp.ne.s32.totalorder %s156, %s159
      %p165 = scmp.eq.s32.totalorder %s15, 0
      %p166 = por %p164, %p165
      %p167 = scmp.ne.s32.totalorder %s156, %s159
      %p168 = scmp.eq.s32.totalorder %s20, 1
      %p169 = por %p167, %p168
      %p170 = scmp.ne.s32.totalorder %s159, %s160
      %p171 = scmp.eq.s32.totalorder %s20, 0
      %p172 = por %p170, %p171
      %p173 = scmp.ne.s32.totalorder %s159, %s160
      %p174 = scmp.eq.s32.totalorder %s21, 1
      %p175 = por %p173, %p174
      %p177 = scmp.ne.s32.totalorder %s160, %s176
      %p178 = scmp.eq.s32.totalorder %s21, 0
      %p179 = por %p177, %p178
      %p180 = scmp.le.s32.totalorder 1, %s15
      %p181 = scmp.lt.s32.totalorder %s15, 3
      %p182 = pnand %p180, %p181
      %p183 = pneg %p182
      // Predicated region
      $region9: #{tpu_custom_call.1} parent=5 // pred_check
        _
      $region10: #{tpu_custom_call.1} parent=5 // pred_check_branch
        %185 = sbr.rel (%p182) target = $region12
      $region11: #{tpu_custom_call.1} parent=5 // pred_region
        %s186 = ssub.s32 %s15, 1
        // Predicated region
        $region13: #{tpu_custom_call.1} parent=11 // pred_check
          %p187 = pneg %p62
        $region14: #{tpu_custom_call.1} parent=11 // pred_check_branch
          %189 = sbr.rel (%p187) target = $region16
        $region15: #{tpu_custom_call.1} parent=11 // pred_region
          _
        $region16: #{tpu_custom_call.1} parent=11 // pred_fallthru
          _
        // Predicated region
        $region17: #{tpu_custom_call.1} parent=11 // pred_check
          %p190 = pneg %p83
        $region18: #{tpu_custom_call.1} parent=11 // pred_check_branch
          %192 = sbr.rel (%p190) target = $region20
        $region19: #{tpu_custom_call.1} parent=11 // pred_region
          _
        $region20: #{tpu_custom_call.1} parent=11 // pred_fallthru
          _
        // Predicated region
        $region21: #{tpu_custom_call.1} parent=11 // pred_check
          %p193 = pneg %p104
        $region22: #{tpu_custom_call.1} parent=11 // pred_check_branch
          %195 = sbr.rel (%p193) target = $region24
        $region23: #{tpu_custom_call.1} parent=11 // pred_region
          _
        $region24: #{tpu_custom_call.1} parent=11 // pred_fallthru
          _
        // Predicated region
        $region25: #{tpu_custom_call.1} parent=11 // pred_check
          %p196 = pneg %p125
        $region26: #{tpu_custom_call.1} parent=11 // pred_check_branch
          %198 = sbr.rel (%p196) target = $region28
        $region27: #{tpu_custom_call.1} parent=11 // pred_region
          _
        $region28: #{tpu_custom_call.1} parent=11 // pred_fallthru
          _
        // Predicated region
        $region29: #{tpu_custom_call.1} parent=11 // pred_check
          %p199 = pneg %p146
        $region30: #{tpu_custom_call.1} parent=11 // pred_check_branch
          %201 = sbr.rel (%p199) target = $region32
        $region31: #{tpu_custom_call.1} parent=11 // pred_region
          _
        $region32: #{tpu_custom_call.1} parent=11 // pred_fallthru
          _
      $region12: #{tpu_custom_call.1} parent=5 // pred_fallthru
        _
      %p202 = scmp.lt.s32.totalorder %s15, 2
      // Predicated region
      $region33: #{tpu_custom_call.1} parent=5 // pred_check
        %p203 = pneg %p202
      $region34: #{tpu_custom_call.1} parent=5 // pred_check_branch
        %205 = sbr.rel (%p203) target = $region36
      $region35: #{tpu_custom_call.1} parent=5 // pred_region
        // Predicated region
        $region37: #{tpu_custom_call.1} parent=35 // pred_check
          %p206 = pneg %p35
        $region38: #{tpu_custom_call.1} parent=35 // pred_check_branch
          %208 = sbr.rel (%p206) target = $region40
        $region39: #{tpu_custom_call.1} parent=35 // pred_region
          %p209 = scmp.lt.s32.totalorder %s15, 1
          %s210 = scalar_select %p209, %s15, 1
          %s211 = smul.addr %s210, 8
          %s212 = scalar_lea.vmem %s0, %s211
        $region40: #{tpu_custom_call.1} parent=35 // pred_fallthru
          _
      $region36: #{tpu_custom_call.1} parent=5 // pred_fallthru
        _
      %p213 = scmp.le.s32.totalorder 1, %s15
      %p214 = scmp.lt.s32.totalorder %s15, 3
      %p215 = pnand %p213, %p214
      %p216 = pneg %p215
      // Predicated region
      $region41: #{tpu_custom_call.1} parent=5 // pred_check
        _
      $region42: #{tpu_custom_call.1} parent=5 // pred_check_branch
        %218 = sbr.rel (%p215) target = $region44
      $region43: #{tpu_custom_call.1} parent=5 // pred_region
        %s219 = ssub.s32 %s15, 1
        %p220 = scmp.lt.s32.totalorder %s20, 1
        %s221 = scalar_select %p220, %s20, 1
        %s222 = smul.addr %s221, 8
        %s223 = scalar_lea.vmem %s0, %s222
        %p224 = pneg %p41
        %p225 = pneg %p38
        %p226 = pneg %p62
        %p227 = pneg %p59
        %p228 = pneg %p83
        %p229 = pneg %p80
        %p230 = pneg %p104
        %p231 = pneg %p101
        %p232 = pneg %p125
        %p233 = pneg %p122
        %p234 = pneg %p146
        %p235 = pneg %p143
        %p236 = pneg %p172
        %p237 = pneg %p169
        %s238 = sand.u32 %s159, 1
        %s239 = scalar_lea.sflag [#allocation4], %s238
        %s240 = sand.u32 %s159, 1
        %s241 = smul.addr %s240, 16
        %s242 = scalar_lea.vmem [#allocation3], %s241
        %p243 = scmp.lt.s32.totalorder %s20, 1
        %s244 = scalar_select %p243, %s20, 1
        %s245 = smul.addr %s244, 8
        %s246 = scalar_lea.vmem %s0, %s245
        %v247 = vlaneseq
        %v248 = vshrl.u32 %v247, 7
        %vm249 = vcmp.eq.s32.totalorder %v248, 0
        %v250 = vsel %vm249, 1.0, 0.0
        %251 = vst [vmem:[#allocation2 + $0x20] sm:$0xff] %v250
        %v252 = vld [vmem:[%s1] sm:$0xff]
        %v253 = vld [vmem:[%s1 + $0x8] sm:$0xff]
        %v254 = vld [vmem:[%s1 + $0x10] sm:$0xff]
        %v255 = vld [vmem:[%s1 + $0x18] sm:$0xff]
        %v256 = vld [vmem:[%s246] sm:$0xff]
        %vm257 = vcmask 64512
        %v259 = vsel %vm257, %v252, 0
        %v262 = vsel %vm257, %v253, 0
        %v265 = vsel %vm257, %v254, 0
        %v268 = vsel %vm257, %v255, 0
        %270 = vmatpush.msra.mxu0 0.0
        %271 = vmatpush.msra.mxu0 0.0
        %272 = vmatpush.msra.mxu0 0.0
        %273 = vmatpush.msra.mxu0 0.0
        %274 = vmatpush.msra.mxu0 0.0
        %275 = vmatpush.msra.mxu0 0.0
        %276 = vmatpush.msra.mxu0 0.0
        %277 = vmatpush.msra.mxu0 0.0
        %278 = vmatpush.msra.mxu0 0.0
        %279 = vmatpush.msra.mxu0 0.0
        %280 = vmatpush.msra.mxu0 0.0
        %281 = vmatpush.msra.mxu0 0.0
        %282 = vmatpush.msra.mxu0 0.0
        %283 = vmatpush.msra.mxu0 0.0
        %284 = vmatpush.msra.mxu0 0.0
        %285 = vmatpush.msra.mxu0 %v256
        %286 = vmatmul.f32.gmra.mxu0 %v259
        %v287 = vpop.f32.mrf.mxu0
        %v288 = vadd.f32 0.0, %v287
        %289 = vmatmul.f32.gmra.mxu0 %v262
        %v290 = vpop.f32.mrf.mxu0
        %v291 = vadd.f32 0.0, %v290
        %292 = vmatmul.f32.gmra.mxu0 %v265
        %v293 = vpop.f32.mrf.mxu0
        %v294 = vadd.f32 0.0, %v293
        %295 = vmatmul.f32.gmra.mxu0 %v268
        %v296 = vpop.f32.mrf.mxu0
        %v297 = vadd.f32 0.0, %v296
        %298 = vdwg.mxu0
        %v299 = vmul.f32 %v288, 0.31830987
        %v300 = vmul.f32 %v291, 0.31830987
        %v301 = vmul.f32 %v294, 0.31830987
        %v302 = vmul.f32 %v297, 0.31830987
        %v303 = vadd.f32 %v299, 0.5
        %v304 = vadd.f32 %v300, 0.5
        %v305 = vadd.f32 %v301, 0.5
        %v306 = vadd.f32 %v302, 0.5
        %v307 = vfloor.f32 %v303
        %v308 = vfloor.f32 %v304
        %v309 = vfloor.f32 %v305
        %v310 = vfloor.f32 %v306
        %v311 = vmul.f32 %v307, 3.140625
        %v312 = vmul.f32 %v308, 3.140625
        %v313 = vmul.f32 %v309, 3.140625
        %v314 = vmul.f32 %v310, 3.140625
        %v315 = vsub.f32 %v288, %v311
        %v316 = vsub.f32 %v291, %v312
        %v317 = vsub.f32 %v294, %v313
        %v318 = vsub.f32 %v297, %v314
        %v319 = vmul.f32 %v307, 0.0009676536
        %v320 = vmul.f32 %v308, 0.0009676536
        %v321 = vmul.f32 %v309, 0.0009676536
        %v322 = vmul.f32 %v310, 0.0009676536
        %v323 = vsub.f32 %v315, %v319
        %v324 = vsub.f32 %v316, %v320
        %v325 = vsub.f32 %v317, %v321
        %v326 = vsub.f32 %v318, %v322
        %v327 = vmul.f32 %v307, 0.5
        %v328 = vmul.f32 %v308, 0.5
        %v329 = vmul.f32 %v309, 0.5
        %v330 = vmul.f32 %v310, 0.5
        %v331 = vfloor.f32 %v327
        %v332 = vfloor.f32 %v328
        %v333 = vfloor.f32 %v329
        %v334 = vfloor.f32 %v330
        %v335 = vsub.f32 %v327, %v331
        %v336 = vsub.f32 %v328, %v332
        %v337 = vsub.f32 %v329, %v333
        %v338 = vsub.f32 %v330, %v334
        %vm339 = vcmp.gt.f32.partialorder %v335, 0.25
        %vm340 = vcmp.gt.f32.partialorder %v336, 0.25
        %vm341 = vcmp.gt.f32.partialorder %v337, 0.25
        %vm342 = vcmp.gt.f32.partialorder %v338, 0.25
        %v343 = vsub.f32 0.0, %v323
        %v344 = vsub.f32 0.0, %v324
        %v345 = vsub.f32 0.0, %v325
        %v346 = vsub.f32 0.0, %v326
        %v347 = vsel %vm339, %v343, %v323
        %v348 = vsel %vm340, %v344, %v324
        %v349 = vsel %vm341, %v345, %v325
        %v350 = vsel %vm342, %v346, %v326
        %v351 = vmul.f32 %v347, %v347
        %v352 = vmul.f32 %v348, %v348
        %v353 = vmul.f32 %v349, %v349
        %v354 = vmul.f32 %v350, %v350
        %v355 = vmul.f32 %v351, 1.6059044e-10
        %v356 = vmul.f32 %v352, 1.6059044e-10
        %v357 = vmul.f32 %v353, 1.6059044e-10
        %v358 = vmul.f32 %v354, 1.6059044e-10
        %v359 = vadd.f32 %v355, -2.5052108e-08
        %v360 = vadd.f32 %v356, -2.5052108e-08
        %v361 = vadd.f32 %v357, -2.5052108e-08
        %v362 = vadd.f32 %v358, -2.5052108e-08
        %v363 = vmul.f32 %v359, %v351
        %v364 = vmul.f32 %v360, %v352
        %v365 = vmul.f32 %v361, %v353
        %v366 = vmul.f32 %v362, %v354
        %v367 = vadd.f32 %v363, 2.7557319e-06
        %v368 = vadd.f32 %v364, 2.7557319e-06
        %v369 = vadd.f32 %v365, 2.7557319e-06
        %v370 = vadd.f32 %v366, 2.7557319e-06
        %v371 = vmul.f32 %v367, %v351
        %v372 = vmul.f32 %v368, %v352
        %v373 = vmul.f32 %v369, %v353
        %v374 = vmul.f32 %v370, %v354
        %v375 = vadd.f32 %v371, -0.0001984127
        %v376 = vadd.f32 %v372, -0.0001984127
        %v377 = vadd.f32 %v373, -0.0001984127
        %v378 = vadd.f32 %v374, -0.0001984127
        %v379 = vmul.f32 %v375, %v351
        %v380 = vmul.f32 %v376, %v352
        %v381 = vmul.f32 %v377, %v353
        %v382 = vmul.f32 %v378, %v354
        %v383 = vadd.f32 %v379, 0.008333334
        %v384 = vadd.f32 %v380, 0.008333334
        %v385 = vadd.f32 %v381, 0.008333334
        %v386 = vadd.f32 %v382, 0.008333334
        %v387 = vmul.f32 %v383, %v351
        %v388 = vmul.f32 %v384, %v352
        %v389 = vmul.f32 %v385, %v353
        %v390 = vmul.f32 %v386, %v354
        %v391 = vadd.f32 %v387, -0.16666667
        %v392 = vadd.f32 %v388, -0.16666667
        %v393 = vadd.f32 %v389, -0.16666667
        %v394 = vadd.f32 %v390, -0.16666667
        %v395 = vmul.f32 %v351, %v391
        %v396 = vmul.f32 %v352, %v392
        %v397 = vmul.f32 %v353, %v393
        %v398 = vmul.f32 %v354, %v394
        %v399 = vmul.f32 %v347, %v395
        %v400 = vmul.f32 %v348, %v396
        %v401 = vmul.f32 %v349, %v397
        %v402 = vmul.f32 %v350, %v398
        %v403 = vadd.f32 %v347, %v399
        %v404 = vadd.f32 %v348, %v400
        %v405 = vadd.f32 %v349, %v401
        %v406 = vadd.f32 %v350, %v402
        %407 = vst [vmem:[#allocation2] sm:$0xff] %v403
        %408 = vst [vmem:[#allocation2 + $0x8] sm:$0xff] %v404
        %409 = vst [vmem:[#allocation2 + $0x10] sm:$0xff] %v405
        %410 = vst [vmem:[#allocation2 + $0x18] sm:$0xff] %v406
        %v411 = vld [vmem:[%s2] sm:$0xff]
        %v412 = vld [vmem:[%s2 + $0x8] sm:$0xff]
        %v413 = vld [vmem:[%s2 + $0x10] sm:$0xff]
        %v414 = vld [vmem:[%s2 + $0x18] sm:$0xff]
        %v415 = vld [vmem:[#allocation2] sm:$0xff]
        %v416 = vld [vmem:[#allocation2 + $0x8] sm:$0xff]
        %v417 = vld [vmem:[#allocation2 + $0x10] sm:$0xff]
        %v418 = vld [vmem:[#allocation2 + $0x18] sm:$0xff]
        %v419 = vld [vmem:[#allocation2 + $0x20] sm:$0xff]
        %vm420 = vcmask 326656
        %v422 = vsel %vm420, %v411, 0
        %v425 = vsel %vm420, %v412, 0
        %v428 = vsel %vm420, %v413, 0
        %v431 = vsel %vm420, %v414, 0
        %433 = vmatpush.msra.mxu0 0.0
        %434 = vmatpush.msra.mxu0 0.0
        %435 = vmatpush.msra.mxu0 0.0
        %436 = vmatpush.msra.mxu0 0.0
        %437 = vmatpush.msra.mxu0 0.0
        %438 = vmatpush.msra.mxu0 0.0
        %439 = vmatpush.msra.mxu0 0.0
        %440 = vmatpush.msra.mxu0 0.0
        %441 = vmatpush.msra.mxu0 0.0
        %442 = vmatpush.msra.mxu0 0.0
        %443 = vmatpush.msra.mxu0 0.0
        %444 = vmatpush.msra.mxu0 %v419
        %445 = vmatpush.msra.mxu0 %v418
        %446 = vmatpush.msra.mxu0 %v417
        %447 = vmatpush.msra.mxu0 %v416
        %448 = vmatpush.msra.mxu0 %v415
        %449 = vmatmul.f32.gmra.mxu0 %v422
        %v450 = vpop.f32.mrf.mxu0
        %v451 = vadd.f32 0.0, %v450
        %452 = vmatmul.f32.gmra.mxu0 %v425
        %v453 = vpop.f32.mrf.mxu0
        %v454 = vadd.f32 0.0, %v453
        %455 = vmatmul.f32.gmra.mxu0 %v428
        %v456 = vpop.f32.mrf.mxu0
        %v457 = vadd.f32 0.0, %v456
        %458 = vmatmul.f32.gmra.mxu0 %v431
        %v459 = vpop.f32.mrf.mxu0
        %v460 = vadd.f32 0.0, %v459
        %461 = vdwg.mxu0
        %v462 = vmul.f32 %v451, 0.31830987
        %v463 = vmul.f32 %v454, 0.31830987
        %v464 = vmul.f32 %v457, 0.31830987
        %v465 = vmul.f32 %v460, 0.31830987
        %v466 = vadd.f32 %v462, 0.5
        %v467 = vadd.f32 %v463, 0.5
        %v468 = vadd.f32 %v464, 0.5
        %v469 = vadd.f32 %v465, 0.5
        %v470 = vfloor.f32 %v466
        %v471 = vfloor.f32 %v467
        %v472 = vfloor.f32 %v468
        %v473 = vfloor.f32 %v469
        %v474 = vmul.f32 %v470, 3.140625
        %v475 = vmul.f32 %v471, 3.140625
        %v476 = vmul.f32 %v472, 3.140625
        %v477 = vmul.f32 %v473, 3.140625
        %v478 = vsub.f32 %v451, %v474
        %v479 = vsub.f32 %v454, %v475
        %v480 = vsub.f32 %v457, %v476
        %v481 = vsub.f32 %v460, %v477
        %v482 = vmul.f32 %v470, 0.0009676536
        %v483 = vmul.f32 %v471, 0.0009676536
        %v484 = vmul.f32 %v472, 0.0009676536
        %v485 = vmul.f32 %v473, 0.0009676536
        %v486 = vsub.f32 %v478, %v482
        %v487 = vsub.f32 %v479, %v483
        %v488 = vsub.f32 %v480, %v484
        %v489 = vsub.f32 %v481, %v485
        %v490 = vmul.f32 %v470, 0.5
        %v491 = vmul.f32 %v471, 0.5
        %v492 = vmul.f32 %v472, 0.5
        %v493 = vmul.f32 %v473, 0.5
        %v494 = vfloor.f32 %v490
        %v495 = vfloor.f32 %v491
        %v496 = vfloor.f32 %v492
        %v497 = vfloor.f32 %v493
        %v498 = vsub.f32 %v490, %v494
        %v499 = vsub.f32 %v491, %v495
        %v500 = vsub.f32 %v492, %v496
        %v501 = vsub.f32 %v493, %v497
        %vm502 = vcmp.gt.f32.partialorder %v498, 0.25
        %vm503 = vcmp.gt.f32.partialorder %v499, 0.25
        %vm504 = vcmp.gt.f32.partialorder %v500, 0.25
        %vm505 = vcmp.gt.f32.partialorder %v501, 0.25
        %v506 = vsub.f32 0.0, %v486
        %v507 = vsub.f32 0.0, %v487
        %v508 = vsub.f32 0.0, %v488
        %v509 = vsub.f32 0.0, %v489
        %v510 = vsel %vm502, %v506, %v486
        %v511 = vsel %vm503, %v507, %v487
        %v512 = vsel %vm504, %v508, %v488
        %v513 = vsel %vm505, %v509, %v489
        %v514 = vmul.f32 %v510, %v510
        %v515 = vmul.f32 %v511, %v511
        %v516 = vmul.f32 %v512, %v512
        %v517 = vmul.f32 %v513, %v513
        %v518 = vmul.f32 %v514, 1.6059044e-10
        %v519 = vmul.f32 %v515, 1.6059044e-10
        %v520 = vmul.f32 %v516, 1.6059044e-10
        %v521 = vmul.f32 %v517, 1.6059044e-10
        %v522 = vadd.f32 %v518, -2.5052108e-08
        %v523 = vadd.f32 %v519, -2.5052108e-08
        %v524 = vadd.f32 %v520, -2.5052108e-08
        %v525 = vadd.f32 %v521, -2.5052108e-08
        %v526 = vmul.f32 %v522, %v514
        %v527 = vmul.f32 %v523, %v515
        %v528 = vmul.f32 %v524, %v516
        %v529 = vmul.f32 %v525, %v517
        %v530 = vadd.f32 %v526, 2.7557319e-06
        %v531 = vadd.f32 %v527, 2.7557319e-06
        %v532 = vadd.f32 %v528, 2.7557319e-06
        %v533 = vadd.f32 %v529, 2.7557319e-06
        %v534 = vmul.f32 %v530, %v514
        %v535 = vmul.f32 %v531, %v515
        %v536 = vmul.f32 %v532, %v516
        %v537 = vmul.f32 %v533, %v517
        %v538 = vadd.f32 %v534, -0.0001984127
        %v539 = vadd.f32 %v535, -0.0001984127
        %v540 = vadd.f32 %v536, -0.0001984127
        %v541 = vadd.f32 %v537, -0.0001984127
        %v542 = vmul.f32 %v538, %v514
        %v543 = vmul.f32 %v539, %v515
        %v544 = vmul.f32 %v540, %v516
        %v545 = vmul.f32 %v541, %v517
        %v546 = vadd.f32 %v542, 0.008333334
        %v547 = vadd.f32 %v543, 0.008333334
        %v548 = vadd.f32 %v544, 0.008333334
        %v549 = vadd.f32 %v545, 0.008333334
        %v550 = vmul.f32 %v546, %v514
        %v551 = vmul.f32 %v547, %v515
        %v552 = vmul.f32 %v548, %v516
        %v553 = vmul.f32 %v549, %v517
        %v554 = vadd.f32 %v550, -0.16666667
        %v555 = vadd.f32 %v551, -0.16666667
        %v556 = vadd.f32 %v552, -0.16666667
        %v557 = vadd.f32 %v553, -0.16666667
        %v558 = vmul.f32 %v514, %v554
        %v559 = vmul.f32 %v515, %v555
        %v560 = vmul.f32 %v516, %v556
        %v561 = vmul.f32 %v517, %v557
        %v562 = vmul.f32 %v510, %v558
        %v563 = vmul.f32 %v511, %v559
        %v564 = vmul.f32 %v512, %v560
        %v565 = vmul.f32 %v513, %v561
        %v566 = vadd.f32 %v510, %v562
        %v567 = vadd.f32 %v511, %v563
        %v568 = vadd.f32 %v512, %v564
        %v569 = vadd.f32 %v513, %v565
        %570 = vst [vmem:[#allocation2] sm:$0xff] %v566
        %571 = vst [vmem:[#allocation2 + $0x8] sm:$0xff] %v567
        %572 = vst [vmem:[#allocation2 + $0x10] sm:$0xff] %v568
        %573 = vst [vmem:[#allocation2 + $0x18] sm:$0xff] %v569
        %s574 = scalar_lea.vmem %s2, 32
        %v575 = vld [vmem:[%s574] sm:$0xff]
        %v576 = vld [vmem:[%s574 + $0x8] sm:$0xff]
        %v577 = vld [vmem:[%s574 + $0x10] sm:$0xff]
        %v578 = vld [vmem:[%s574 + $0x18] sm:$0xff]
        %v579 = vld [vmem:[#allocation2] sm:$0xff]
        %v580 = vld [vmem:[#allocation2 + $0x8] sm:$0xff]
        %v581 = vld [vmem:[#allocation2 + $0x10] sm:$0xff]
        %v582 = vld [vmem:[#allocation2 + $0x18] sm:$0xff]
        %v583 = vld [vmem:[#allocation2 + $0x20] sm:$0xff]
        %v585 = vsel %vm420, %v575, 0
        %v588 = vsel %vm420, %v576, 0
        %v591 = vsel %vm420, %v577, 0
        %v594 = vsel %vm420, %v578, 0
        %596 = vmatpush.msra.mxu0 0.0
        %597 = vmatpush.msra.mxu0 0.0
        %598 = vmatpush.msra.mxu0 0.0
        %599 = vmatpush.msra.mxu0 0.0
        %600 = vmatpush.msra.mxu0 0.0
        %601 = vmatpush.msra.mxu0 0.0
        %602 = vmatpush.msra.mxu0 0.0
        %603 = vmatpush.msra.mxu0 0.0
        %604 = vmatpush.msra.mxu0 0.0
        %605 = vmatpush.msra.mxu0 0.0
        %606 = vmatpush.msra.mxu0 0.0
        %607 = vmatpush.msra.mxu0 %v583
        %608 = vmatpush.msra.mxu0 %v582
        %609 = vmatpush.msra.mxu0 %v581
        %610 = vmatpush.msra.mxu0 %v580
        %611 = vmatpush.msra.mxu0 %v579
        %612 = vmatmul.f32.gmra.mxu0 %v585
        %v613 = vpop.f32.mrf.mxu0
        %v614 = vadd.f32 0.0, %v613
        %615 = vmatmul.f32.gmra.mxu0 %v588
        %v616 = vpop.f32.mrf.mxu0
        %v617 = vadd.f32 0.0, %v616
        %618 = vmatmul.f32.gmra.mxu0 %v591
        %v619 = vpop.f32.mrf.mxu0
        %v620 = vadd.f32 0.0, %v619
        %621 = vmatmul.f32.gmra.mxu0 %v594
        %v622 = vpop.f32.mrf.mxu0
        %v623 = vadd.f32 0.0, %v622
        %624 = vdwg.mxu0
        %v625 = vmul.f32 %v614, 0.31830987
        %v626 = vmul.f32 %v617, 0.31830987
        %v627 = vmul.f32 %v620, 0.31830987
        %v628 = vmul.f32 %v623, 0.31830987
        %v629 = vadd.f32 %v625, 0.5
        %v630 = vadd.f32 %v626, 0.5
        %v631 = vadd.f32 %v627, 0.5
        %v632 = vadd.f32 %v628, 0.5
        %v633 = vfloor.f32 %v629
        %v634 = vfloor.f32 %v630
        %v635 = vfloor.f32 %v631
        %v636 = vfloor.f32 %v632
        %v637 = vmul.f32 %v633, 3.140625
        %v638 = vmul.f32 %v634, 3.140625
        %v639 = vmul.f32 %v635, 3.140625
        %v640 = vmul.f32 %v636, 3.140625
        %v641 = vsub.f32 %v614, %v637
        %v642 = vsub.f32 %v617, %v638
        %v643 = vsub.f32 %v620, %v639
        %v644 = vsub.f32 %v623, %v640
        %v645 = vmul.f32 %v633, 0.0009676536
        %v646 = vmul.f32 %v634, 0.0009676536
        %v647 = vmul.f32 %v635, 0.0009676536
        %v648 = vmul.f32 %v636, 0.0009676536
        %v649 = vsub.f32 %v641, %v645
        %v650 = vsub.f32 %v642, %v646
        %v651 = vsub.f32 %v643, %v647
        %v652 = vsub.f32 %v644, %v648
        %v653 = vmul.f32 %v633, 0.5
        %v654 = vmul.f32 %v634, 0.5
        %v655 = vmul.f32 %v635, 0.5
        %v656 = vmul.f32 %v636, 0.5
        %v657 = vfloor.f32 %v653
        %v658 = vfloor.f32 %v654
        %v659 = vfloor.f32 %v655
        %v660 = vfloor.f32 %v656
        %v661 = vsub.f32 %v653, %v657
        %v662 = vsub.f32 %v654, %v658
        %v663 = vsub.f32 %v655, %v659
        %v664 = vsub.f32 %v656, %v660
        %vm665 = vcmp.gt.f32.partialorder %v661, 0.25
        %vm666 = vcmp.gt.f32.partialorder %v662, 0.25
        %vm667 = vcmp.gt.f32.partialorder %v663, 0.25
        %vm668 = vcmp.gt.f32.partialorder %v664, 0.25
        %v669 = vsub.f32 0.0, %v649
        %v670 = vsub.f32 0.0, %v650
        %v671 = vsub.f32 0.0, %v651
        %v672 = vsub.f32 0.0, %v652
        %v673 = vsel %vm665, %v669, %v649
        %v674 = vsel %vm666, %v670, %v650
        %v675 = vsel %vm667, %v671, %v651
        %v676 = vsel %vm668, %v672, %v652
        %v677 = vmul.f32 %v673, %v673
        %v678 = vmul.f32 %v674, %v674
        %v679 = vmul.f32 %v675, %v675
        %v680 = vmul.f32 %v676, %v676
        %v681 = vmul.f32 %v677, 1.6059044e-10
        %v682 = vmul.f32 %v678, 1.6059044e-10
        %v683 = vmul.f32 %v679, 1.6059044e-10
        %v684 = vmul.f32 %v680, 1.6059044e-10
        %v685 = vadd.f32 %v681, -2.5052108e-08
        %v686 = vadd.f32 %v682, -2.5052108e-08
        %v687 = vadd.f32 %v683, -2.5052108e-08
        %v688 = vadd.f32 %v684, -2.5052108e-08
        %v689 = vmul.f32 %v685, %v677
        %v690 = vmul.f32 %v686, %v678
        %v691 = vmul.f32 %v687, %v679
        %v692 = vmul.f32 %v688, %v680
        %v693 = vadd.f32 %v689, 2.7557319e-06
        %v694 = vadd.f32 %v690, 2.7557319e-06
        %v695 = vadd.f32 %v691, 2.7557319e-06
        %v696 = vadd.f32 %v692, 2.7557319e-06
        %v697 = vmul.f32 %v693, %v677
        %v698 = vmul.f32 %v694, %v678
        %v699 = vmul.f32 %v695, %v679
        %v700 = vmul.f32 %v696, %v680
        %v701 = vadd.f32 %v697, -0.0001984127
        %v702 = vadd.f32 %v698, -0.0001984127
        %v703 = vadd.f32 %v699, -0.0001984127
        %v704 = vadd.f32 %v700, -0.0001984127
        %v705 = vmul.f32 %v701, %v677
        %v706 = vmul.f32 %v702, %v678
        %v707 = vmul.f32 %v703, %v679
        %v708 = vmul.f32 %v704, %v680
        %v709 = vadd.f32 %v705, 0.008333334
        %v710 = vadd.f32 %v706, 0.008333334
        %v711 = vadd.f32 %v707, 0.008333334
        %v712 = vadd.f32 %v708, 0.008333334
        %v713 = vmul.f32 %v709, %v677
        %v714 = vmul.f32 %v710, %v678
        %v715 = vmul.f32 %v711, %v679
        %v716 = vmul.f32 %v712, %v680
        %v717 = vadd.f32 %v713, -0.16666667
        %v718 = vadd.f32 %v714, -0.16666667
        %v719 = vadd.f32 %v715, -0.16666667
        %v720 = vadd.f32 %v716, -0.16666667
        %v721 = vmul.f32 %v677, %v717
        %v722 = vmul.f32 %v678, %v718
        %v723 = vmul.f32 %v679, %v719
        %v724 = vmul.f32 %v680, %v720
        %v725 = vmul.f32 %v673, %v721
        %v726 = vmul.f32 %v674, %v722
        %v727 = vmul.f32 %v675, %v723
        %v728 = vmul.f32 %v676, %v724
        %v729 = vadd.f32 %v673, %v725
        %v730 = vadd.f32 %v674, %v726
        %v731 = vadd.f32 %v675, %v727
        %v732 = vadd.f32 %v676, %v728
        %733 = vst [vmem:[#allocation2] sm:$0xff] %v729
        %734 = vst [vmem:[#allocation2 + $0x8] sm:$0xff] %v730
        %735 = vst [vmem:[#allocation2 + $0x10] sm:$0xff] %v731
        %736 = vst [vmem:[#allocation2 + $0x18] sm:$0xff] %v732
        %v737 = vld [vmem:[%s3] sm:$0xff]
        %v738 = vld [vmem:[%s3 + $0x8] sm:$0xff]
        %v739 = vld [vmem:[%s3 + $0x10] sm:$0xff]
        %v740 = vld [vmem:[%s3 + $0x18] sm:$0xff]
        %v741 = vld [vmem:[%s3 + $0x20] sm:$0xff]
        %v742 = vld [vmem:[%s3 + $0x28] sm:$0xff]
        %v743 = vld [vmem:[%s3 + $0x30] sm:$0xff]
        %v744 = vld [vmem:[%s3 + $0x38] sm:$0xff]
        %v745 = vld [vmem:[%s3 + $0x40] sm:$0xff]
        %v746 = vld [vmem:[%s3 + $0x48] sm:$0xff]
        %v747 = vld [vmem:[%s3 + $0x50] sm:$0xff]
        %v748 = vld [vmem:[%s3 + $0x58] sm:$0xff]
        %v749 = vld [vmem:[#allocation2] sm:$0xff]
        %v750 = vld [vmem:[#allocation2 + $0x8] sm:$0xff]
        %v751 = vld [vmem:[#allocation2 + $0x10] sm:$0xff]
        %v752 = vld [vmem:[#allocation2 + $0x18] sm:$0xff]
        %v753 = vld [vmem:[#allocation2 + $0x20] sm:$0xff]
        %v755 = vsel %vm420, %v737, 0
        %v758 = vsel %vm420, %v738, 0
        %v761 = vsel %vm420, %v739, 0
        %v764 = vsel %vm420, %v740, 0
        %v767 = vsel %vm420, %v741, 0
        %v770 = vsel %vm420, %v742, 0
        %v773 = vsel %vm420, %v743, 0
        %v776 = vsel %vm420, %v744, 0
        %v779 = vsel %vm420, %v745, 0
        %v782 = vsel %vm420, %v746, 0
        %v785 = vsel %vm420, %v747, 0
        %v788 = vsel %vm420, %v748, 0
        %790 = vmatpush.msra.mxu0 0.0
        %791 = vmatpush.msra.mxu0 0.0
        %792 = vmatpush.msra.mxu0 0.0
        %793 = vmatpush.msra.mxu0 0.0
        %794 = vmatpush.msra.mxu0 0.0
        %795 = vmatpush.msra.mxu0 0.0
        %796 = vmatpush.msra.mxu0 0.0
        %797 = vmatpush.msra.mxu0 0.0
        %798 = vmatpush.msra.mxu0 0.0
        %799 = vmatpush.msra.mxu0 0.0
        %800 = vmatpush.msra.mxu0 0.0
        %801 = vmatpush.msra.mxu0 %v753
        %802 = vmatpush.msra.mxu0 %v752
        %803 = vmatpush.msra.mxu0 %v751
        %804 = vmatpush.msra.mxu0 %v750
        %805 = vmatpush.msra.mxu0 %v749
        %806 = vmatmul.f32.gmra.mxu0 %v755
        %v807 = vpop.f32.mrf.mxu0
        %v808 = vadd.f32 0.0, %v807
        %809 = vmatmul.f32.gmra.mxu0 %v758
        %v810 = vpop.f32.mrf.mxu0
        %v811 = vadd.f32 0.0, %v810
        %812 = vmatmul.f32.gmra.mxu0 %v761
        %v813 = vpop.f32.mrf.mxu0
        %v814 = vadd.f32 0.0, %v813
        %815 = vmatmul.f32.gmra.mxu0 %v764
        %v816 = vpop.f32.mrf.mxu0
        %v817 = vadd.f32 0.0, %v816
        %818 = vmatmul.f32.gmra.mxu0 %v767
        %v819 = vpop.f32.mrf.mxu0
        %v820 = vadd.f32 0.0, %v819
        %821 = vmatmul.f32.gmra.mxu0 %v770
        %v822 = vpop.f32.mrf.mxu0
        %v823 = vadd.f32 0.0, %v822
        %824 = vmatmul.f32.gmra.mxu0 %v773
        %v825 = vpop.f32.mrf.mxu0
        %v826 = vadd.f32 0.0, %v825
        %827 = vmatmul.f32.gmra.mxu0 %v776
        %v828 = vpop.f32.mrf.mxu0
        %v829 = vadd.f32 0.0, %v828
        %830 = vmatmul.f32.gmra.mxu0 %v779
        %v831 = vpop.f32.mrf.mxu0
        %v832 = vadd.f32 0.0, %v831
        %833 = vmatmul.f32.gmra.mxu0 %v782
        %v834 = vpop.f32.mrf.mxu0
        %v835 = vadd.f32 0.0, %v834
        %836 = vmatmul.f32.gmra.mxu0 %v785
        %v837 = vpop.f32.mrf.mxu0
        %v838 = vadd.f32 0.0, %v837
        %839 = vmatmul.f32.gmra.mxu0 %v788
        %v840 = vpop.f32.mrf.mxu0
        %v841 = vadd.f32 0.0, %v840
        %842 = vdwg.mxu0
        %v843 = vmul.f32 %v808, 0.31830987
        %v844 = vmul.f32 %v811, 0.31830987
        %v845 = vmul.f32 %v814, 0.31830987
        %v846 = vmul.f32 %v817, 0.31830987
        %v847 = vmul.f32 %v820, 0.31830987
        %v848 = vmul.f32 %v823, 0.31830987
        %v849 = vmul.f32 %v826, 0.31830987
        %v850 = vmul.f32 %v829, 0.31830987
        %v851 = vmul.f32 %v832, 0.31830987
        %v852 = vmul.f32 %v835, 0.31830987
        %v853 = vmul.f32 %v838, 0.31830987
        %v854 = vmul.f32 %v841, 0.31830987
        %v855 = vadd.f32 %v843, 0.5
        %v856 = vadd.f32 %v844, 0.5
        %v857 = vadd.f32 %v845, 0.5
        %v858 = vadd.f32 %v846, 0.5
        %v859 = vadd.f32 %v847, 0.5
        %v860 = vadd.f32 %v848, 0.5
        %v861 = vadd.f32 %v849, 0.5
        %v862 = vadd.f32 %v850, 0.5
        %v863 = vadd.f32 %v851, 0.5
        %v864 = vadd.f32 %v852, 0.5
        %v865 = vadd.f32 %v853, 0.5
        %v866 = vadd.f32 %v854, 0.5
        %v867 = vfloor.f32 %v855
        %v868 = vfloor.f32 %v856
        %v869 = vfloor.f32 %v857
        %v870 = vfloor.f32 %v858
        %v871 = vfloor.f32 %v859
        %v872 = vfloor.f32 %v860
        %v873 = vfloor.f32 %v861
        %v874 = vfloor.f32 %v862
        %v875 = vfloor.f32 %v863
        %v876 = vfloor.f32 %v864
        %v877 = vfloor.f32 %v865
        %v878 = vfloor.f32 %v866
        %v879 = vmul.f32 %v867, 3.140625
        %v880 = vmul.f32 %v868, 3.140625
        %v881 = vmul.f32 %v869, 3.140625
        %v882 = vmul.f32 %v870, 3.140625
        %v883 = vmul.f32 %v871, 3.140625
        %v884 = vmul.f32 %v872, 3.140625
        %v885 = vmul.f32 %v873, 3.140625
        %v886 = vmul.f32 %v874, 3.140625
        %v887 = vmul.f32 %v875, 3.140625
        %v888 = vmul.f32 %v876, 3.140625
        %v889 = vmul.f32 %v877, 3.140625
        %v890 = vmul.f32 %v878, 3.140625
        %v891 = vsub.f32 %v808, %v879
        %v892 = vsub.f32 %v811, %v880
        %v893 = vsub.f32 %v814, %v881
        %v894 = vsub.f32 %v817, %v882
        %v895 = vsub.f32 %v820, %v883
        %v896 = vsub.f32 %v823, %v884
        %v897 = vsub.f32 %v826, %v885
        %v898 = vsub.f32 %v829, %v886
        %v899 = vsub.f32 %v832, %v887
        %v900 = vsub.f32 %v835, %v888
        %v901 = vsub.f32 %v838, %v889
        %v902 = vsub.f32 %v841, %v890
        %v903 = vmul.f32 %v867, 0.0009676536
        %v904 = vmul.f32 %v868, 0.0009676536
        %v905 = vmul.f32 %v869, 0.0009676536
        %v906 = vmul.f32 %v870, 0.0009676536
        %v907 = vmul.f32 %v871, 0.0009676536
        %v908 = vmul.f32 %v872, 0.0009676536
        %v909 = vmul.f32 %v873, 0.0009676536
        %v910 = vmul.f32 %v874, 0.0009676536
        %v911 = vmul.f32 %v875, 0.0009676536
        %v912 = vmul.f32 %v876, 0.0009676536
        %v913 = vmul.f32 %v877, 0.0009676536
        %v914 = vmul.f32 %v878, 0.0009676536
        %v915 = vsub.f32 %v891, %v903
        %v916 = vsub.f32 %v892, %v904
        %v917 = vsub.f32 %v893, %v905
        %v918 = vsub.f32 %v894, %v906
        %v919 = vsub.f32 %v895, %v907
        %v920 = vsub.f32 %v896, %v908
        %v921 = vsub.f32 %v897, %v909
        %v922 = vsub.f32 %v898, %v910
        %v923 = vsub.f32 %v899, %v911
        %v924 = vsub.f32 %v900, %v912
        %v925 = vsub.f32 %v901, %v913
        %v926 = vsub.f32 %v902, %v914
        %v927 = vmul.f32 %v867, 0.5
        %v928 = vmul.f32 %v868, 0.5
        %v929 = vmul.f32 %v869, 0.5
        %v930 = vmul.f32 %v870, 0.5
        %v931 = vmul.f32 %v871, 0.5
        %v932 = vmul.f32 %v872, 0.5
        %v933 = vmul.f32 %v873, 0.5
        %v934 = vmul.f32 %v874, 0.5
        %v935 = vmul.f32 %v875, 0.5
        %v936 = vmul.f32 %v876, 0.5
        %v937 = vmul.f32 %v877, 0.5
        %v938 = vmul.f32 %v878, 0.5
        %v939 = vfloor.f32 %v927
        %v940 = vfloor.f32 %v928
        %v941 = vfloor.f32 %v929
        %v942 = vfloor.f32 %v930
        %v943 = vfloor.f32 %v931
        %v944 = vfloor.f32 %v932
        %v945 = vfloor.f32 %v933
        %v946 = vfloor.f32 %v934
        %v947 = vfloor.f32 %v935
        %v948 = vfloor.f32 %v936
        %v949 = vfloor.f32 %v937
        %v950 = vfloor.f32 %v938
        %v951 = vsub.f32 %v927, %v939
        %v952 = vsub.f32 %v928, %v940
        %v953 = vsub.f32 %v929, %v941
        %v954 = vsub.f32 %v930, %v942
        %v955 = vsub.f32 %v931, %v943
        %v956 = vsub.f32 %v932, %v944
        %v957 = vsub.f32 %v933, %v945
        %v958 = vsub.f32 %v934, %v946
        %v959 = vsub.f32 %v935, %v947
        %v960 = vsub.f32 %v936, %v948
        %v961 = vsub.f32 %v937, %v949
        %v962 = vsub.f32 %v938, %v950
        %vm963 = vcmp.gt.f32.partialorder %v951, 0.25
        %vm964 = vcmp.gt.f32.partialorder %v952, 0.25
        %vm965 = vcmp.gt.f32.partialorder %v953, 0.25
        %vm966 = vcmp.gt.f32.partialorder %v954, 0.25
        %vm967 = vcmp.gt.f32.partialorder %v955, 0.25
        %vm968 = vcmp.gt.f32.partialorder %v956, 0.25
        %vm969 = vcmp.gt.f32.partialorder %v957, 0.25
        %vm970 = vcmp.gt.f32.partialorder %v958, 0.25
        %vm971 = vcmp.gt.f32.partialorder %v959, 0.25
        %vm972 = vcmp.gt.f32.partialorder %v960, 0.25
        %vm973 = vcmp.gt.f32.partialorder %v961, 0.25
        %vm974 = vcmp.gt.f32.partialorder %v962, 0.25
        %v975 = vsub.f32 0.0, %v915
        %v976 = vsub.f32 0.0, %v916
        %v977 = vsub.f32 0.0, %v917
        %v978 = vsub.f32 0.0, %v918
        %v979 = vsub.f32 0.0, %v919
        %v980 = vsub.f32 0.0, %v920
        %v981 = vsub.f32 0.0, %v921
        %v982 = vsub.f32 0.0, %v922
        %v983 = vsub.f32 0.0, %v923
        %v984 = vsub.f32 0.0, %v924
        %v985 = vsub.f32 0.0, %v925
        %v986 = vsub.f32 0.0, %v926
        %v987 = vsel %vm963, %v975, %v915
        %v988 = vsel %vm964, %v976, %v916
        %v989 = vsel %vm965, %v977, %v917
        %v990 = vsel %vm966, %v978, %v918
        %v991 = vsel %vm967, %v979, %v919
        %v992 = vsel %vm968, %v980, %v920
        %v993 = vsel %vm969, %v981, %v921
        %v994 = vsel %vm970, %v982, %v922
        %v995 = vsel %vm971, %v983, %v923
        %v996 = vsel %vm972, %v984, %v924
        %v997 = vsel %vm973, %v985, %v925
        %v998 = vsel %vm974, %v986, %v926
        %v999 = vmul.f32 %v987, %v987
        %v1000 = vmul.f32 %v988, %v988
        %v1001 = vmul.f32 %v989, %v989
        %v1002 = vmul.f32 %v990, %v990
        %v1003 = vmul.f32 %v991, %v991
        %v1004 = vmul.f32 %v992, %v992
        %v1005 = vmul.f32 %v993, %v993
        %v1006 = vmul.f32 %v994, %v994
        %v1007 = vmul.f32 %v995, %v995
        %v1008 = vmul.f32 %v996, %v996
        %v1009 = vmul.f32 %v997, %v997
        %v1010 = vmul.f32 %v998, %v998
        %v1011 = vmul.f32 %v999, 1.6059044e-10
        %v1012 = vmul.f32 %v1000, 1.6059044e-10
        %v1013 = vmul.f32 %v1001, 1.6059044e-10
        %v1014 = vmul.f32 %v1002, 1.6059044e-10
        %v1015 = vmul.f32 %v1003, 1.6059044e-10
        %v1016 = vmul.f32 %v1004, 1.6059044e-10
        %v1017 = vmul.f32 %v1005, 1.6059044e-10
        %v1018 = vmul.f32 %v1006, 1.6059044e-10
        %v1019 = vmul.f32 %v1007, 1.6059044e-10
        %v1020 = vmul.f32 %v1008, 1.6059044e-10
        %v1021 = vmul.f32 %v1009, 1.6059044e-10
        %v1022 = vmul.f32 %v1010, 1.6059044e-10
        %v1023 = vadd.f32 %v1011, -2.5052108e-08
        %v1024 = vadd.f32 %v1012, -2.5052108e-08
        %v1025 = vadd.f32 %v1013, -2.5052108e-08
        %v1026 = vadd.f32 %v1014, -2.5052108e-08
        %v1027 = vadd.f32 %v1015, -2.5052108e-08
        %v1028 = vadd.f32 %v1016, -2.5052108e-08
        %v1029 = vadd.f32 %v1017, -2.5052108e-08
        %v1030 = vadd.f32 %v1018, -2.5052108e-08
        %v1031 = vadd.f32 %v1019, -2.5052108e-08
        %v1032 = vadd.f32 %v1020, -2.5052108e-08
        %v1033 = vadd.f32 %v1021, -2.5052108e-08
        %v1034 = vadd.f32 %v1022, -2.5052108e-08
        %v1035 = vmul.f32 %v1023, %v999
        %v1036 = vmul.f32 %v1024, %v1000
        %v1037 = vmul.f32 %v1025, %v1001
        %v1038 = vmul.f32 %v1026, %v1002
        %v1039 = vmul.f32 %v1027, %v1003
        %v1040 = vmul.f32 %v1028, %v1004
        %v1041 = vmul.f32 %v1029, %v1005
        %v1042 = vmul.f32 %v1030, %v1006
        %v1043 = vmul.f32 %v1031, %v1007
        %v1044 = vmul.f32 %v1032, %v1008
        %v1045 = vmul.f32 %v1033, %v1009
        %v1046 = vmul.f32 %v1034, %v1010
        %v1047 = vadd.f32 %v1035, 2.7557319e-06
        %v1048 = vadd.f32 %v1036, 2.7557319e-06
        %v1049 = vadd.f32 %v1037, 2.7557319e-06
        %v1050 = vadd.f32 %v1038, 2.7557319e-06
        %v1051 = vadd.f32 %v1039, 2.7557319e-06
        %v1052 = vadd.f32 %v1040, 2.7557319e-06
        %v1053 = vadd.f32 %v1041, 2.7557319e-06
        %v1054 = vadd.f32 %v1042, 2.7557319e-06
        %v1055 = vadd.f32 %v1043, 2.7557319e-06
        %v1056 = vadd.f32 %v1044, 2.7557319e-06
        %v1057 = vadd.f32 %v1045, 2.7557319e-06
        %v1058 = vadd.f32 %v1046, 2.7557319e-06
        %v1059 = vmul.f32 %v1047, %v999
        %v1060 = vmul.f32 %v1048, %v1000
        %v1061 = vmul.f32 %v1049, %v1001
        %v1062 = vmul.f32 %v1050, %v1002
        %v1063 = vmul.f32 %v1051, %v1003
        %v1064 = vmul.f32 %v1052, %v1004
        %v1065 = vmul.f32 %v1053, %v1005
        %v1066 = vmul.f32 %v1054, %v1006
        %v1067 = vmul.f32 %v1055, %v1007
        %v1068 = vmul.f32 %v1056, %v1008
        %v1069 = vmul.f32 %v1057, %v1009
        %v1070 = vmul.f32 %v1058, %v1010
        %v1071 = vadd.f32 %v1059, -0.0001984127
        %v1072 = vadd.f32 %v1060, -0.0001984127
        %v1073 = vadd.f32 %v1061, -0.0001984127
        %v1074 = vadd.f32 %v1062, -0.0001984127
        %v1075 = vadd.f32 %v1063, -0.0001984127
        %v1076 = vadd.f32 %v1064, -0.0001984127
        %v1077 = vadd.f32 %v1065, -0.0001984127
        %v1078 = vadd.f32 %v1066, -0.0001984127
        %v1079 = vadd.f32 %v1067, -0.0001984127
        %v1080 = vadd.f32 %v1068, -0.0001984127
        %v1081 = vadd.f32 %v1069, -0.0001984127
        %v1082 = vadd.f32 %v1070, -0.0001984127
        %v1083 = vmul.f32 %v1071, %v999
        %v1084 = vmul.f32 %v1072, %v1000
        %v1085 = vmul.f32 %v1073, %v1001
        %v1086 = vmul.f32 %v1074, %v1002
        %v1087 = vmul.f32 %v1075, %v1003
        %v1088 = vmul.f32 %v1076, %v1004
        %v1089 = vmul.f32 %v1077, %v1005
        %v1090 = vmul.f32 %v1078, %v1006
        %v1091 = vmul.f32 %v1079, %v1007
        %v1092 = vmul.f32 %v1080, %v1008
        %v1093 = vmul.f32 %v1081, %v1009
        %v1094 = vmul.f32 %v1082, %v1010
        %v1095 = vadd.f32 %v1083, 0.008333334
        %v1096 = vadd.f32 %v1084, 0.008333334
        %v1097 = vadd.f32 %v1085, 0.008333334
        %v1098 = vadd.f32 %v1086, 0.008333334
        %v1099 = vadd.f32 %v1087, 0.008333334
        %v1100 = vadd.f32 %v1088, 0.008333334
        %v1101 = vadd.f32 %v1089, 0.008333334
        %v1102 = vadd.f32 %v1090, 0.008333334
        %v1103 = vadd.f32 %v1091, 0.008333334
        %v1104 = vadd.f32 %v1092, 0.008333334
        %v1105 = vadd.f32 %v1093, 0.008333334
        %v1106 = vadd.f32 %v1094, 0.008333334
        %v1107 = vmul.f32 %v1095, %v999
        %v1108 = vmul.f32 %v1096, %v1000
        %v1109 = vmul.f32 %v1097, %v1001
        %v1110 = vmul.f32 %v1098, %v1002
        %v1111 = vmul.f32 %v1099, %v1003
        %v1112 = vmul.f32 %v1100, %v1004
        %v1113 = vmul.f32 %v1101, %v1005
        %v1114 = vmul.f32 %v1102, %v1006
        %v1115 = vmul.f32 %v1103, %v1007
        %v1116 = vmul.f32 %v1104, %v1008
        %v1117 = vmul.f32 %v1105, %v1009
        %v1118 = vmul.f32 %v1106, %v1010
        %v1119 = vadd.f32 %v1107, -0.16666667
        %v1120 = vadd.f32 %v1108, -0.16666667
        %v1121 = vadd.f32 %v1109, -0.16666667
        %v1122 = vadd.f32 %v1110, -0.16666667
        %v1123 = vadd.f32 %v1111, -0.16666667
        %v1124 = vadd.f32 %v1112, -0.16666667
        %v1125 = vadd.f32 %v1113, -0.16666667
        %v1126 = vadd.f32 %v1114, -0.16666667
        %v1127 = vadd.f32 %v1115, -0.16666667
        %v1128 = vadd.f32 %v1116, -0.16666667
        %v1129 = vadd.f32 %v1117, -0.16666667
        %v1130 = vadd.f32 %v1118, -0.16666667
        %v1131 = vmul.f32 %v999, %v1119
        %v1132 = vmul.f32 %v1000, %v1120
        %v1133 = vmul.f32 %v1001, %v1121
        %v1134 = vmul.f32 %v1002, %v1122
        %v1135 = vmul.f32 %v1003, %v1123
        %v1136 = vmul.f32 %v1004, %v1124
        %v1137 = vmul.f32 %v1005, %v1125
        %v1138 = vmul.f32 %v1006, %v1126
        %v1139 = vmul.f32 %v1007, %v1127
        %v1140 = vmul.f32 %v1008, %v1128
        %v1141 = vmul.f32 %v1009, %v1129
        %v1142 = vmul.f32 %v1010, %v1130
        %v1143 = vmul.f32 %v987, %v1131
        %v1144 = vmul.f32 %v988, %v1132
        %v1145 = vmul.f32 %v989, %v1133
        %v1146 = vmul.f32 %v990, %v1134
        %v1147 = vmul.f32 %v991, %v1135
        %v1148 = vmul.f32 %v992, %v1136
        %v1149 = vmul.f32 %v993, %v1137
        %v1150 = vmul.f32 %v994, %v1138
        %v1151 = vmul.f32 %v995, %v1139
        %v1152 = vmul.f32 %v996, %v1140
        %v1153 = vmul.f32 %v997, %v1141
        %v1154 = vmul.f32 %v998, %v1142
        %v1155 = vadd.f32 %v987, %v1143
        %v1156 = vadd.f32 %v988, %v1144
        %v1157 = vadd.f32 %v989, %v1145
        %v1158 = vadd.f32 %v990, %v1146
        %v1159 = vadd.f32 %v991, %v1147
        %v1160 = vadd.f32 %v992, %v1148
        %v1161 = vadd.f32 %v993, %v1149
        %v1162 = vadd.f32 %v994, %v1150
        %v1163 = vadd.f32 %v995, %v1151
        %v1164 = vadd.f32 %v996, %v1152
        %v1165 = vadd.f32 %v997, %v1153
        %v1166 = vadd.f32 %v998, %v1154
        %v1167 = vld [vmem:[%s4] sm:$0xff]
        %v1168 = vld [vmem:[%s4 + $0x8] sm:$0x1]
        %v1169 = vld [vmem:[%s5] sm:$0xff]
        %v1170 = vld [vmem:[%s5 + $0x8] sm:$0x1]
        %1172 = vset.pattern.permute.xlu0 0
        %1173 = vperm.xlu0 %1172, %v1169
        %v1174 = vpop.permute.xlu0 %1173
        %1177 = vset.pattern.permute.xlu0 0
        %1178 = vperm.xlu0 %1177, %v1170
        %v1179 = vpop.permute.xlu0 %1178
        %vm1181 = vcmask 785408
        %v1183 = vsel %vm1181, %v1167, 0
        %v1186 = vsel %vm1181, %v1168, 0
        %1188 = vmatpush.msra.mxu0 0.0
        %1189 = vmatpush.msra.mxu0 0.0
        %1190 = vmatpush.msra.mxu0 0.0
        %1191 = vmatpush.msra.mxu0 0.0
        %1192 = vmatpush.msra.mxu0 %v1166
        %1193 = vmatpush.msra.mxu0 %v1165
        %1194 = vmatpush.msra.mxu0 %v1164
        %1195 = vmatpush.msra.mxu0 %v1163
        %1196 = vmatpush.msra.mxu0 %v1162
        %1197 = vmatpush.msra.mxu0 %v1161
        %1198 = vmatpush.msra.mxu0 %v1160
        %1199 = vmatpush.msra.mxu0 %v1159
        %1200 = vmatpush.msra.mxu0 %v1158
        %1201 = vmatpush.msra.mxu0 %v1157
        %1202 = vmatpush.msra.mxu0 %v1156
        %1203 = vmatpush.msra.mxu0 %v1155
        %1204 = vmatmul.f32.gmra.mxu0 %v1183
        %v1205 = vpop.f32.mrf.mxu0
        %v1206 = vadd.f32 %v1174, %v1205
        %1207 = vmatmul.f32.gmra.mxu0 %v1186
        %v1208 = vpop.f32.mrf.mxu0
        %v1209 = vadd.f32 %v1179, %v1208
        %1210 = vdwg.mxu0
        %1211 = vst [vmem:[%s242] sm:$0xff] %v1206
        %1212 = vst [vmem:[%s242 + $0x8] sm:$0x1] %v1209
        %s1213 = sand.u32 %s159, 1
        %s1214 = scalar_lea.sflag [#allocation4], %s1213
        %s1215 = sand.u32 %s159, 1
        %s1216 = smul.addr %s1215, 16
        %s1217 = scalar_lea.vmem [#allocation3], %s1216
        // Predicated region
        $region45: #{tpu_custom_call.1} parent=43 // pred_check
          %p1218 = pneg %p169
        $region46: #{tpu_custom_call.1} parent=43 // pred_check_branch
          %1220 = sbr.rel (%p1218) target = $region48
        $region47: #{tpu_custom_call.1} parent=43 // pred_region
          %1222 = vsyncadd %s1214, 0
          %s1223 = smul.addr %s20, 8
          %s1224 = scalar_lea.hbm %s6, %s1223
          %s1225 = sshll.u32 %s1217, 4
          %s1226 = int_to_ptr.vmem [resolvable:$true] %s1225
          %s1227 = sshll.u32 %s1224, 4
          %s1228 = int_to_ptr.hbm [resolvable:$true] %s1227
          %1233 = dma.vmem_to_hbm [thread:$0]  %s1226, 256, %s1228, %s1214, 128, 256, 8
        $region48: #{tpu_custom_call.1} parent=43 // pred_fallthru
          _
      $region44: #{tpu_custom_call.1} parent=5 // pred_fallthru
        _
      %p1234 = scmp.le.s32.totalorder 2, %s15
      // Predicated region
      $region49: #{tpu_custom_call.1} parent=5 // pred_check
        %p1235 = pneg %p1234
      $region50: #{tpu_custom_call.1} parent=5 // pred_check_branch
        %1237 = sbr.rel (%p1235) target = $region52
      $region51: #{tpu_custom_call.1} parent=5 // pred_region
        %s1238 = ssub.s32 %s15, 2
        // Predicated region
        $region53: #{tpu_custom_call.1} parent=51 // pred_check
          %p1239 = pneg %p175
        $region54: #{tpu_custom_call.1} parent=51 // pred_check_branch
          %1241 = sbr.rel (%p1239) target = $region56
        $region55: #{tpu_custom_call.1} parent=51 // pred_region
          %s1242 = sand.u32 %s160, 1
          %s1243 = scalar_lea.sflag [#allocation4], %s1242
          %s1244 = sand.u32 %s160, 1
          %s1245 = smul.addr %s1244, 16
          %s1246 = scalar_lea.vmem [#allocation3], %s1245
          %1248 = dma.done %s1243, 256
        $region56: #{tpu_custom_call.1} parent=51 // pred_fallthru
          _
      $region52: #{tpu_custom_call.1} parent=5 // pred_fallthru
        _
    $region6: #{tpu_custom_call.1} parent=1 // loop_footer
      %s19 = sadd.s32 1, %s15
    $region7: #{tpu_custom_call.1} parent=1 // loop_footer_branch
      %14 = sbr.rel target = $region3
    $region8: #{tpu_custom_call.1} parent=1 // loop_exit
      _
    %1249 = vsyncpa [#allocation4], 1
    %s1250 = scalar_lea.sflag [#allocation4], 1
    %1251 = vsyncpa %s1250, 1

</llo_original>
